<compile_context>
chip_gen: v7x
topology: tpu7x:2x2x1
jax: 0.10.0
libtpu: 0.0.40
codegen_flags: <defaults>
</compile_context>

<pallas_src>
import functools
import math

import jax
import jax.numpy as jnp
from jax.experimental import pallas as pl
from jax.experimental.pallas import tpu as pltpu


NEG_INF = -1e30  # large finite negative (avoids -inf NaN hazards in softmax)


# --------------------------- hardware-dependent knobs ---------------------------

@functools.lru_cache(maxsize=None)
def _tpu_vmem_capacity_bytes():
    try:
        return int(pltpu.get_tpu_info().vmem_capacity_bytes)
    except Exception:
        return 64 * 1024 * 1024  # conservative (v7x-sized) fallback


@functools.lru_cache(maxsize=None)
def _vmem_limit():
    cap = _tpu_vmem_capacity_bytes()
    return min((cap * 3) // 4, 100 * 1024 * 1024)


@functools.lru_cache(maxsize=None)
def _default_linear_tiles():
    # Large tiles on v5e/v6e (128 MiB VMEM), moderate on v7x (64 MiB VMEM).
    if _tpu_vmem_capacity_bytes() >= 96 * 1024 * 1024:
        return 512, 1024, 512
    return 256, 512, 512


def _pick_tile(dim, target, granules=(128, 16, 8)):
    """Largest tile <= target dividing `dim` that is a multiple of one of
    `granules` (tried in order), falling back to the full dim (always legal)."""
    if isinstance(granules, int):
        granules = (granules,)
    if dim <= target:
        return dim
    for g in granules:
        t = (target // g) * g
        while t >= g:
            if dim % t == 0:
                return t
            t -= g
    return dim


# --------------------------- layernorm kernel ---------------------------

def _layernorm_kernel(x_ref, w_ref, b_ref, o_ref):
    x = x_ref[...].astype(jnp.float32)
    mean = jnp.mean(x, axis=-1, keepdims=True)
    xc = x - mean
    var = jnp.mean(xc * xc, axis=-1, keepdims=True)      # biased var (F.layer_norm)
    inv = jax.lax.rsqrt(var + 1e-5)
    y = xc * inv * w_ref[...].astype(jnp.float32) + b_ref[...].astype(jnp.float32)
    o_ref[...] = y.astype(o_ref.dtype)


def layernorm(x2d, w, b, *, block_rows=512):
    """x2d: (M, C) f32 residual stream -> (M, C) bf16 normalized activations."""
    M, C = x2d.shape
    tm = _pick_tile(M, block_rows, (16, 8))
    return pl.pallas_call(
        _layernorm_kernel,
        out_shape=jax.ShapeDtypeStruct((M, C), jnp.bfloat16),
        grid=(M // tm,),
        in_specs=[
            pl.BlockSpec((tm, C), lambda i: (i, 0)),
            pl.BlockSpec((1, C), lambda i: (0, 0)),
            pl.BlockSpec((1, C), lambda i: (0, 0)),
        ],
        out_specs=pl.BlockSpec((tm, C), lambda i: (i, 0)),
        compiler_params=pltpu.CompilerParams(
            dimension_semantics=("parallel",),
            vmem_limit_bytes=_vmem_limit()),
    )(x2d, w.reshape(1, C), b.reshape(1, C))


# ------------------- tiled linear (+bias +gelu +residual) -------------------

def _linear_kernel(*refs, activation, has_res):
    if has_res:
        x_ref, w_ref, b_ref, res_ref, o_ref, acc_ref = refs
    else:
        x_ref, w_ref, b_ref, o_ref, acc_ref = refs
        res_ref = None
    k = pl.program_id(2)

    @pl.when(k == 0)
    def _():
        acc_ref[...] = jnp.zeros_like(acc_ref)

    a = x_ref[...]
    if a.dtype != jnp.bfloat16:          # static (trace-time) check
        a = a.astype(jnp.bfloat16)
    w = w_ref[...]
    if w.dtype != jnp.bfloat16:
        w = w.astype(jnp.bfloat16)
    acc_ref[...] += jnp.dot(a, w, preferred_element_type=jnp.float32)

    @pl.when(k == pl.num_programs(2) - 1)
    def _():
        y = acc_ref[...] + b_ref[...].astype(jnp.float32)
        if activation == "gelu":
            # exact GELU (torch.nn.GELU default, erf form), in f32
            y = 0.5 * y * (1.0 + jax.lax.erf(y * (1.0 / math.sqrt(2.0))))
        if has_res:
            y = y + res_ref[...].astype(jnp.float32)
        o_ref[...] = y.astype(o_ref.dtype)


def linear(x2d, w, b, *, activation=None, residual=None,
           out_dtype=jnp.float32, tm=None, tn=None, tk=None):
    """out = act(x2d @ w + b) [+ residual] with a tiled K-accumulating matmul.
    x2d: (M, K) bf16, w: (K, N) bf16, b: (N,) f32, residual: (M, N) f32."""
    M, K = x2d.shape
    K2, N = w.shape
    assert K == K2
    dtm, dtn, dtk = _default_linear_tiles()
    tm = _pick_tile(M, tm or dtm, (128, 16))
    tn = _pick_tile(N, tn or dtn, (128,))
    tk = _pick_tile(K, tk or dtk, (128,))
    grid = (M // tm, N // tn, K // tk)
    has_res = residual is not None

    in_specs = [
        pl.BlockSpec((tm, tk), lambda i, j, k: (i, k)),
        # TODO(synk): try pipeline_mode=pl.Buffered(3) on the weight stream if
        #             profiling shows the K-loop DMA exposed at large K.
        pl.BlockSpec((tk, tn), lambda i, j, k: (k, j)),
        pl.BlockSpec((1, tn), lambda i, j, k: (0, j)),
    ]
    inputs = [x2d, w, b.reshape(1, N)]
    if has_res:
        in_specs.append(pl.BlockSpec((tm, tn), lambda i, j, k: (i, j)))
        inputs.append(residual)

    out_itemsize = jnp.dtype(out_dtype).itemsize
    bytes_accessed = (x2d.size * x2d.dtype.itemsize
                      + w.size * w.dtype.itemsize
                      + b.size * b.dtype.itemsize
                      + M * N * out_itemsize
                      + (residual.size * residual.dtype.itemsize if has_res else 0))
    cost = pl.CostEstimate(
        flops=2 * M * N * K,
        transcendentals=(M * N if activation == "gelu" else 0),
        bytes_accessed=bytes_accessed)

    kern = functools.partial(_linear_kernel, activation=activation, has_res=has_res)
    return pl.pallas_call(
        kern,
        out_shape=jax.ShapeDtypeStruct((M, N), out_dtype),
        grid=grid,
        in_specs=in_specs,
        out_specs=pl.BlockSpec((tm, tn), lambda i, j, k: (i, j)),
        scratch_shapes=[pltpu.VMEM((tm, tn), jnp.float32)],
        compiler_params=pltpu.CompilerParams(
            dimension_semantics=("parallel", "parallel", "arbitrary"),
            vmem_limit_bytes=_vmem_limit()),
        cost_estimate=cost,
    )(*inputs)


# ----------------------- flash-style causal attention -----------------------

def _flash_attn_kernel(q_ref, k_ref, v_ref, o_ref, m_ref, l_ref, acc_ref,
                       *, scale, tq, tk):
    qi = pl.program_id(1)
    ki = pl.program_id(2)
    q_start = qi * tq
    k_start = ki * tk

    @pl.when(ki == 0)
    def _():
        m_ref[...] = jnp.full_like(m_ref, NEG_INF)
        l_ref[...] = jnp.zeros_like(l_ref)
        acc_ref[...] = jnp.zeros_like(acc_ref)

    # Skip KV blocks that are entirely above the causal diagonal for this q tile.
    @pl.when(k_start <= q_start + tq - 1)
    def _():
        q = q_ref[0]                                   # (tq, hd) bf16
        kk = k_ref[0]                                  # (tk, hd) bf16
        v = v_ref[0]                                   # (tk, hd) bf16
        # contract on the last dims -> no XLU transpose of K
        s = jax.lax.dot_general(
            q, kk, (((1,), (1,)), ((), ())),
            preferred_element_type=jnp.float32) * scale           # (tq, tk) f32
        row = q_start + jax.lax.broadcasted_iota(jnp.int32, (tq, tk), 0)
        col = k_start + jax.lax.broadcasted_iota(jnp.int32, (tq, tk), 1)
        s = jnp.where(col <= row, s, NEG_INF)

        m_prev = m_ref[...]
        m_new = jnp.maximum(m_prev, jnp.max(s, axis=-1, keepdims=True))
        alpha = jnp.exp(m_prev - m_new)
        p = jnp.exp(s - m_new)
        l_ref[...] = alpha * l_ref[...] + jnp.sum(p, axis=-1, keepdims=True)
        acc_ref[...] = alpha * acc_ref[...] + jnp.dot(
            p.astype(jnp.bfloat16), v, preferred_element_type=jnp.float32)
        m_ref[...] = m_new

    @pl.when(ki == pl.num_programs(2) - 1)
    def _():
        inv_l = pl.reciprocal(l_ref[...], approx=True)
        o_ref[0] = (acc_ref[...] * inv_l).astype(o_ref.dtype)


def flash_attention(q, k, v, *, tq=256, tk=512):
    """q, k, v: (B*H, T, hd) bf16 -> (B*H, T, hd) bf16 causal attention."""
    BH, T, hd = q.shape
    tq = _pick_tile(T, tq, (128, 16, 8))
    tk = _pick_tile(T, tk, (128, 16, 8))
    scale = 1.0 / math.sqrt(hd)
    kern = functools.partial(_flash_attn_kernel, scale=scale, tq=tq, tk=tk)
    return pl.pallas_call(
        kern,
        out_shape=jax.ShapeDtypeStruct((BH, T, hd), jnp.bfloat16),
        grid=(BH, T // tq, T // tk),
        in_specs=[
            pl.BlockSpec((1, tq, hd), lambda b, qi, ki: (b, qi, 0)),
            pl.BlockSpec((1, tk, hd), lambda b, qi, ki: (b, ki, 0)),
            pl.BlockSpec((1, tk, hd), lambda b, qi, ki: (b, ki, 0)),
        ],
        out_specs=pl.BlockSpec((1, tq, hd), lambda b, qi, ki: (b, qi, 0)),
        scratch_shapes=[
            pltpu.VMEM((tq, 1), jnp.float32),    # running max m
            pltpu.VMEM((tq, 1), jnp.float32),    # running denom l
            pltpu.VMEM((tq, hd), jnp.float32),   # output accumulator
        ],
        compiler_params=pltpu.CompilerParams(
            dimension_semantics=("parallel", "parallel", "arbitrary"),
            vmem_limit_bytes=_vmem_limit()),
    )(q, k, v)


# ------------------------------ Block forward ------------------------------

def block_forward(p, x, n_head):
    """x: (B, T, C) f32 -> (B, T, C) f32.  Matches PyTorch Block.forward with
    dropout == 0.0 (eval)."""
    B, T, C = x.shape
    hd = C // n_head
    M = B * T
    x2d = x.reshape(M, C)                                        # f32 residual stream

    # ---- attention branch ----
    h = layernorm(x2d, p["ln1_w"], p["ln1_b"])                   # (M, C) bf16
    qkv = linear(h, p["attn_w"], p["attn_b"],
                 out_dtype=jnp.bfloat16)                         # (M, 3C) bf16
    # Head split: wrapper-side layout plumbing on the bf16 slab so the flash
    # kernel sees lane-aligned (B*H, T, hd) operands.
    # TODO(synk): fuse this relayout (and the merge below) into the adjacent
    #             matmul BlockSpecs to save the two bandwidth passes.
    qkv_h = qkv.reshape(B, T, 3, n_head, hd).transpose(2, 0, 3, 1, 4)  # (3,B,H,T,hd)
    q = qkv_h[0].reshape(B * n_head, T, hd)
    k = qkv_h[1].reshape(B * n_head, T, hd)
    v = qkv_h[2].reshape(B * n_head, T, hd)
    y = flash_attention(q, k, v)                                 # (B*H, T, hd) bf16
    y2d = y.reshape(B, n_head, T, hd).transpose(0, 2, 1, 3).reshape(M, C)
    # c_proj + residual fused into the matmul epilogue (residual stream stays f32)
    x2d = linear(y2d, p["attn_proj_w"], p["attn_proj_b"],
                 residual=x2d, out_dtype=jnp.float32)            # x + attn(ln1(x))

    # ---- MLP branch ----
    # TODO(synk): when tn == C, fuse ln2 into the attn-proj epilogue to drop a
    #             full (M, C) HBM read + write.
    h2 = layernorm(x2d, p["ln2_w"], p["ln2_b"])                  # (M, C) bf16
    m = linear(h2, p["fc_w"], p["fc_b"], activation="gelu",
               out_dtype=jnp.bfloat16)                           # (M, 4C) bf16
    x2d = linear(m, p["mlp_proj_w"], p["mlp_proj_b"],
                 residual=x2d, out_dtype=jnp.float32)            # x + mlp(ln2(x))
    return x2d.reshape(B, T, C)


# ----------------------- params + pure-JAX reference -----------------------

def init_block_params(key, C, n_head, n_layer=2):
    std = 0.02
    proj_std = 0.02 / math.sqrt(2 * n_layer)
    k1, k2, k3, k4, k5, k6, k7, k8 = jax.random.split(key, 8)
    # weights stored in bf16 (MXU operands); biases / LN params stay f32.
    return {
        "ln1_w": jnp.ones((C,), jnp.float32),
        "ln1_b": jnp.zeros((C,), jnp.float32),
        "attn_w": (jax.random.normal(k1, (C, 3 * C), jnp.float32) * std).astype(jnp.bfloat16),
        "attn_b": jax.random.normal(k5, (3 * C,), jnp.float32) * std,
        "attn_proj_w": (jax.random.normal(k2, (C, C), jnp.float32) * proj_std).astype(jnp.bfloat16),
        "attn_proj_b": jax.random.normal(k6, (C,), jnp.float32) * std,
        "ln2_w": jnp.ones((C,), jnp.float32),
        "ln2_b": jnp.zeros((C,), jnp.float32),
        "fc_w": (jax.random.normal(k3, (C, 4 * C), jnp.float32) * std).astype(jnp.bfloat16),
        "fc_b": jax.random.normal(k7, (4 * C,), jnp.float32) * std,
        "mlp_proj_w": (jax.random.normal(k4, (4 * C, C), jnp.float32) * proj_std).astype(jnp.bfloat16),
        "mlp_proj_b": jax.random.normal(k8, (C,), jnp.float32) * std,
    }


def block_reference(p, x, n_head):
    """Pure-JAX f32 reference of the PyTorch Block forward (dropout = 0)."""
    def ln(v, w, b):
        mu = jnp.mean(v, axis=-1, keepdims=True)
        var = jnp.mean((v - mu) ** 2, axis=-1, keepdims=True)
        return (v - mu) * jax.lax.rsqrt(var + 1e-5) * w + b

    B, T, C = x.shape
    hd = C // n_head
    h = ln(x, p["ln1_w"], p["ln1_b"])
    qkv = h @ p["attn_w"].astype(jnp.float32) + p["attn_b"]
    q, k, v = jnp.split(qkv, 3, axis=-1)

    def heads(a):
        return a.reshape(B, T, n_head, hd).transpose(0, 2, 1, 3)

    q, k, v = heads(q), heads(k), heads(v)
    s = jnp.einsum("bhqd,bhkd->bhqk", q, k) * (1.0 / math.sqrt(hd))
    mask = jnp.tril(jnp.ones((T, T), bool))
    s = jnp.where(mask, s, -jnp.inf)
    a = jax.nn.softmax(s, axis=-1)
    y = jnp.einsum("bhqk,bhkd->bhqd", a, v)
    y = y.transpose(0, 2, 1, 3).reshape(B, T, C)
    x = x + (y @ p["attn_proj_w"].astype(jnp.float32) + p["attn_proj_b"])

    h2 = ln(x, p["ln2_w"], p["ln2_b"])
    m = h2 @ p["fc_w"].astype(jnp.float32) + p["fc_b"]
    m = 0.5 * m * (1.0 + jax.lax.erf(m * (1.0 / math.sqrt(2.0))))
    x = x + (m @ p["mlp_proj_w"].astype(jnp.float32) + p["mlp_proj_b"])
    return x


# ------------------------------------ main ------------------------------------

if __name__ == "__main__":
    B, T, C, n_head = 2, 8, 64, 4

    key = jax.random.PRNGKey(0)
    kx, kp = jax.random.split(key)
    params = init_block_params(kp, C, n_head)
    x = jax.random.normal(kx, (B, T, C), jnp.float32)

    fwd = jax.jit(functools.partial(block_forward, n_head=n_head))
    out = fwd(params, x)
    jax.block_until_ready(out)

    assert out.shape == (B, T, C), out.shape
    assert bool(jnp.all(jnp.isfinite(out)))

    ref = block_reference(params, x, n_head)
    err = float(jnp.max(jnp.abs(out - ref)))
    # bf16 intermediate activations + bf16 MXU operands (f32 accumulate) +
    # approx softmax reciprocal -> loose tolerance vs the all-f32 reference.
    # TODO(synk): not suitable as-is for training-grade numerics.
    assert err < 5e-2, f"max abs err {err}"

    print("KERNEL_OK")
</pallas_src>

<mosaic_0001>
module attributes {stable_mosaic.version = 11 : i64} {
  func.func @_linear_kernel(%arg0: i32, %arg1: i32, %arg2: i32, %arg3: memref<16x64xbf16, #tpu.memory_space<vmem>>, %arg4: memref<64x192xbf16, #tpu.memory_space<vmem>>, %arg5: memref<1x192xf32, #tpu.memory_space<vmem>>, %arg6: memref<16x192xbf16, #tpu.memory_space<vmem>>, %arg7: memref<16x192xf32, #tpu.memory_space<vmem>>) attributes {dimension_semantics = [#tpu.dimension_semantics<parallel>, #tpu.dimension_semantics<parallel>, #tpu.dimension_semantics<arbitrary>], iteration_bounds = array<i64: 1, 1, 1>, scalar_prefetch = 0 : i64, scratch_operands = 1 : i64, tpu.core_type = #tpu.core_type<tc>, window_params = [{transform_indices = @transform_0, window_bounds = array<i64: 16, 64>}, {transform_indices = @transform_1, window_bounds = array<i64: 64, 192>}, {transform_indices = @transform_2, window_bounds = array<i64: 1, 192>}, {transform_indices = @transform_3, window_bounds = array<i64: 16, 192>}]} {
    %c0_i32 = arith.constant 0 : i32
    %0 = arith.cmpi eq, %arg2, %c0_i32 : i32
    %1 = arith.extui %0 : i1 to i32
    %c0_i32_0 = arith.constant 0 : i32
    %2 = arith.cmpi ne, %1, %c0_i32_0 : i32
    scf.if %2 {
      %cst_10 = arith.constant 0.000000e+00 : f32
      %12 = vector.broadcast %cst_10 : f32 to vector<16x192xf32>
      %c0_11 = arith.constant 0 : index
      %c0_12 = arith.constant 0 : index
      %13 = vector.load %arg7[%c0_11, %c0_12] : memref<16x192xf32, #tpu.memory_space<vmem>>, vector<16x192xf32>
      tpu.vector_store %arg7[%c0_11, %c0_12], %12 {strides = array<i32>} : memref<16x192xf32, #tpu.memory_space<vmem>>, vector<16x192xf32>,
    } else {
    }
    %c0 = arith.constant 0 : index
    %c0_1 = arith.constant 0 : index
    %3 = vector.load %arg3[%c0, %c0_1] : memref<16x64xbf16, #tpu.memory_space<vmem>>, vector<16x64xbf16>
    %c0_2 = arith.constant 0 : index
    %c0_3 = arith.constant 0 : index
    %4 = vector.load %arg4[%c0_2, %c0_3] : memref<64x192xbf16, #tpu.memory_space<vmem>>, vector<64x192xbf16>
    %c0_4 = arith.constant 0 : index
    %c0_5 = arith.constant 0 : index
    %5 = vector.load %arg7[%c0_4, %c0_5] : memref<16x192xf32, #tpu.memory_space<vmem>>, vector<16x192xf32>
    %cst = arith.constant dense<0.000000e+00> : vector<16x192xf32>
    %6 = tpu.matmul %3, %4, %cst {dimension_numbers = #tpu.dot_dimension_numbers<[1], [0], [0], [1], [0, 0, 1, 1], [], []>} : vector<16x64xbf16>, vector<64x192xbf16>, vector<16x192xf32> -> vector<16x192xf32>
    %7 = arith.addf %5, %6 : vector<16x192xf32>
    %c0_6 = arith.constant 0 : index
    %c0_7 = arith.constant 0 : index
    %8 = vector.load %arg7[%c0_6, %c0_7] : memref<16x192xf32, #tpu.memory_space<vmem>>, vector<16x192xf32>
    tpu.vector_store %arg7[%c0_6, %c0_7], %7 {strides = array<i32>} : memref<16x192xf32, #tpu.memory_space<vmem>>, vector<16x192xf32>,
    %c0_i32_8 = arith.constant 0 : i32
    %9 = arith.cmpi eq, %arg2, %c0_i32_8 : i32
    %10 = arith.extui %9 : i1 to i32
    %c0_i32_9 = arith.constant 0 : i32
    %11 = arith.cmpi ne, %10, %c0_i32_9 : i32
    scf.if %11 {
      %c0_10 = arith.constant 0 : index
      %c0_11 = arith.constant 0 : index
      %12 = vector.load %arg7[%c0_10, %c0_11] : memref<16x192xf32, #tpu.memory_space<vmem>>, vector<16x192xf32>
      %c0_12 = arith.constant 0 : index
      %c0_13 = arith.constant 0 : index
      %13 = vector.load %arg5[%c0_12, %c0_13] : memref<1x192xf32, #tpu.memory_space<vmem>>, vector<1x192xf32>
      %14 = vector.broadcast %13 : vector<1x192xf32> to vector<16x192xf32>
      %15 = arith.addf %12, %14 : vector<16x192xf32>
      %16 = arith.truncf %15 : vector<16x192xf32> to vector<16x192xbf16>
      %c0_14 = arith.constant 0 : index
      %c0_15 = arith.constant 0 : index
      %17 = vector.load %arg6[%c0_14, %c0_15] : memref<16x192xbf16, #tpu.memory_space<vmem>>, vector<16x192xbf16>
      tpu.vector_store %arg6[%c0_14, %c0_15], %16 {strides = array<i32>} : memref<16x192xbf16, #tpu.memory_space<vmem>>, vector<16x192xbf16>,
    } else {
    }
    return
  }
  func.func @transform_0(%arg0: i32, %arg1: i32, %arg2: i32) -> (i32, i32) {
    %c0_i32 = arith.constant 0 : i32
    return %arg0, %arg2 : i32, i32
  }
  func.func @transform_1(%arg0: i32, %arg1: i32, %arg2: i32) -> (i32, i32) {
    %c0_i32 = arith.constant 0 : i32
    return %arg2, %arg1 : i32, i32
  }
  func.func @transform_2(%arg0: i32, %arg1: i32, %arg2: i32) -> (i32, i32) {
    %c0_i32 = arith.constant 0 : i32
    %c0_i32_0 = arith.constant 0 : i32
    return %c0_i32, %arg1 : i32, i32
  }
  func.func @transform_3(%arg0: i32, %arg1: i32, %arg2: i32) -> (i32, i32) {
    %c0_i32 = arith.constant 0 : i32
    return %arg0, %arg1 : i32, i32
  }
}

module attributes {stable_mosaic.version = 11 : i64} {
  func.func @_layernorm_kernel(%arg0: i32, %arg1: memref<16x64xf32, #tpu.memory_space<vmem>>, %arg2: memref<1x64xf32, #tpu.memory_space<vmem>>, %arg3: memref<1x64xf32, #tpu.memory_space<vmem>>, %arg4: memref<16x64xbf16, #tpu.memory_space<vmem>>) attributes {dimension_semantics = [#tpu.dimension_semantics<parallel>], iteration_bounds = array<i64: 1>, scalar_prefetch = 0 : i64, scratch_operands = 0 : i64, tpu.core_type = #tpu.core_type<tc>, window_params = [{transform_indices = @transform_0, window_bounds = array<i64: 16, 64>}, {pipeline_mode = #tpu.pipeline_mode<synchronous>, transform_indices = @transform_1, window_bounds = array<i64: 1, 64>}, {pipeline_mode = #tpu.pipeline_mode<synchronous>, transform_indices = @transform_2, window_bounds = array<i64: 1, 64>}, {transform_indices = @transform_3, window_bounds = array<i64: 16, 64>}]} {
    %c0 = arith.constant 0 : index
    %c0_0 = arith.constant 0 : index
    %0 = vector.load %arg1[%c0, %c0_0] : memref<16x64xf32, #tpu.memory_space<vmem>>, vector<16x64xf32>
    %cst = arith.constant dense<0.000000e+00> : vector<16xf32>
    %1 = vector.multi_reduction <add>, %0, %cst [1] : vector<16x64xf32> to vector<16xf32>
    %2 = vector.shape_cast %1 : vector<16xf32> to vector<16x1xf32>
    %cst_1 = arith.constant 6.400000e+01 : f32
    %3 = vector.broadcast %cst_1 : f32 to vector<16x1xf32>
    %4 = arith.divf %2, %3 : vector<16x1xf32>
    %5 = vector.broadcast %4 : vector<16x1xf32> to vector<16x64xf32>
    %6 = arith.subf %0, %5 : vector<16x64xf32>
    %7 = arith.mulf %6, %6 : vector<16x64xf32>
    %cst_2 = arith.constant dense<0.000000e+00> : vector<16xf32>
    %8 = vector.multi_reduction <add>, %7, %cst_2 [1] : vector<16x64xf32> to vector<16xf32>
    %9 = vector.shape_cast %8 : vector<16xf32> to vector<16x1xf32>
    %cst_3 = arith.constant 6.400000e+01 : f32
    %10 = vector.broadcast %cst_3 : f32 to vector<16x1xf32>
    %11 = arith.divf %9, %10 : vector<16x1xf32>
    %cst_4 = arith.constant 9.99999974E-6 : f32
    %12 = vector.broadcast %cst_4 : f32 to vector<16x1xf32>
    %13 = arith.addf %11, %12 : vector<16x1xf32>
    %14 = math.rsqrt %13 : vector<16x1xf32>
    %15 = vector.broadcast %14 : vector<16x1xf32> to vector<16x64xf32>
    %16 = arith.mulf %6, %15 : vector<16x64xf32>
    %c0_5 = arith.constant 0 : index
    %c0_6 = arith.constant 0 : index
    %17 = vector.load %arg2[%c0_5, %c0_6] : memref<1x64xf32, #tpu.memory_space<vmem>>, vector<1x64xf32>
    %18 = vector.broadcast %17 : vector<1x64xf32> to vector<16x64xf32>
    %19 = arith.mulf %16, %18 : vector<16x64xf32>
    %c0_7 = arith.constant 0 : index
    %c0_8 = arith.constant 0 : index
    %20 = vector.load %arg3[%c0_7, %c0_8] : memref<1x64xf32, #tpu.memory_space<vmem>>, vector<1x64xf32>
    %21 = vector.broadcast %20 : vector<1x64xf32> to vector<16x64xf32>
    %22 = arith.addf %19, %21 : vector<16x64xf32>
    %23 = arith.truncf %22 : vector<16x64xf32> to vector<16x64xbf16>
    %c0_9 = arith.constant 0 : index
    %c0_10 = arith.constant 0 : index
    %24 = vector.load %arg4[%c0_9, %c0_10] : memref<16x64xbf16, #tpu.memory_space<vmem>>, vector<16x64xbf16>
    tpu.vector_store %arg4[%c0_9, %c0_10], %23 {strides = array<i32>} : memref<16x64xbf16, #tpu.memory_space<vmem>>, vector<16x64xbf16>,
    return
  }
  func.func @transform_0(%arg0: i32) -> (i32, i32) {
    %c0_i32 = arith.constant 0 : i32
    %c0_i32_0 = arith.constant 0 : i32
    return %arg0, %c0_i32 : i32, i32
  }
  func.func @transform_1(%arg0: i32) -> (i32, i32) {
    %c0_i32 = arith.constant 0 : i32
    %c0_i32_0 = arith.constant 0 : i32
    %c0_i32_1 = arith.constant 0 : i32
    return %c0_i32, %c0_i32_0 : i32, i32
  }
  func.func @transform_2(%arg0: i32) -> (i32, i32) {
    %c0_i32 = arith.constant 0 : i32
    %c0_i32_0 = arith.constant 0 : i32
    %c0_i32_1 = arith.constant 0 : i32
    return %c0_i32, %c0_i32_0 : i32, i32
  }
  func.func @transform_3(%arg0: i32) -> (i32, i32) {
    %c0_i32 = arith.constant 0 : i32
    %c0_i32_0 = arith.constant 0 : i32
    return %arg0, %c0_i32 : i32, i32
  }
}

module attributes {stable_mosaic.version = 11 : i64} {
  func.func @_flash_attn_kernel(%arg0: i32, %arg1: i32, %arg2: i32, %arg3: memref<1x8x16xbf16, #tpu.memory_space<vmem>>, %arg4: memref<1x8x16xbf16, #tpu.memory_space<vmem>>, %arg5: memref<1x8x16xbf16, #tpu.memory_space<vmem>>, %arg6: memref<1x8x16xbf16, #tpu.memory_space<vmem>>, %arg7: memref<8x1xf32, #tpu.memory_space<vmem>>, %arg8: memref<8x1xf32, #tpu.memory_space<vmem>>, %arg9: memref<8x16xf32, #tpu.memory_space<vmem>>) attributes {dimension_semantics = [#tpu.dimension_semantics<parallel>, #tpu.dimension_semantics<parallel>, #tpu.dimension_semantics<arbitrary>], iteration_bounds = array<i64: 8, 1, 1>, scalar_prefetch = 0 : i64, scratch_operands = 3 : i64, tpu.core_type = #tpu.core_type<tc>, window_params = [{transform_indices = @transform_0, window_bounds = array<i64: 1, 8, 16>}, {transform_indices = @transform_1, window_bounds = array<i64: 1, 8, 16>}, {transform_indices = @transform_2, window_bounds = array<i64: 1, 8, 16>}, {transform_indices = @transform_3, window_bounds = array<i64: 1, 8, 16>}]} {
    %c8_i32 = arith.constant 8 : i32
    %0 = arith.muli %arg1, %c8_i32 : i32
    %c8_i32_0 = arith.constant 8 : i32
    %1 = arith.muli %arg2, %c8_i32_0 : i32
    %c0_i32 = arith.constant 0 : i32
    %2 = arith.cmpi eq, %arg2, %c0_i32 : i32
    %3 = arith.extui %2 : i1 to i32
    %c0_i32_1 = arith.constant 0 : i32
    %4 = arith.cmpi ne, %3, %c0_i32_1 : i32
    scf.if %4 {
      %cst = arith.constant -1.000000e+30 : f32
      %13 = vector.broadcast %cst : f32 to vector<8x1xf32>
      %c0 = arith.constant 0 : index
      %c0_6 = arith.constant 0 : index
      %14 = vector.load %arg7[%c0, %c0_6] : memref<8x1xf32, #tpu.memory_space<vmem>>, vector<8x1xf32>
      tpu.vector_store %arg7[%c0, %c0_6], %13 {strides = array<i32>} : memref<8x1xf32, #tpu.memory_space<vmem>>, vector<8x1xf32>,
      %cst_7 = arith.constant 0.000000e+00 : f32
      %15 = vector.broadcast %cst_7 : f32 to vector<8x1xf32>
      %c0_8 = arith.constant 0 : index
      %c0_9 = arith.constant 0 : index
      %16 = vector.load %arg8[%c0_8, %c0_9] : memref<8x1xf32, #tpu.memory_space<vmem>>, vector<8x1xf32>
      tpu.vector_store %arg8[%c0_8, %c0_9], %15 {strides = array<i32>} : memref<8x1xf32, #tpu.memory_space<vmem>>, vector<8x1xf32>,
      %cst_10 = arith.constant 0.000000e+00 : f32
      %17 = vector.broadcast %cst_10 : f32 to vector<8x16xf32>
      %c0_11 = arith.constant 0 : index
      %c0_12 = arith.constant 0 : index
      %18 = vector.load %arg9[%c0_11, %c0_12] : memref<8x16xf32, #tpu.memory_space<vmem>>, vector<8x16xf32>
      tpu.vector_store %arg9[%c0_11, %c0_12], %17 {strides = array<i32>} : memref<8x16xf32, #tpu.memory_space<vmem>>, vector<8x16xf32>,
    } else {
    }
    %c8_i32_2 = arith.constant 8 : i32
    %5 = arith.addi %0, %c8_i32_2 : i32
    %c1_i32 = arith.constant 1 : i32
    %6 = arith.subi %5, %c1_i32 : i32
    %7 = arith.cmpi sle, %1, %6 : i32
    %8 = arith.extui %7 : i1 to i32
    %c0_i32_3 = arith.constant 0 : i32
    %9 = arith.cmpi ne, %8, %c0_i32_3 : i32
    scf.if %9 {
      %c0 = arith.constant 0 : index
      %c0_6 = arith.constant 0 : index
      %c0_7 = arith.constant 0 : index
      %13 = vector.load %arg3[%c0, %c0_6, %c0_7] : memref<1x8x16xbf16, #tpu.memory_space<vmem>>, vector<1x8x16xbf16>
      %14 = vector.shape_cast %13 : vector<1x8x16xbf16> to vector<8x16xbf16>
      %c0_8 = arith.constant 0 : index
      %c0_9 = arith.constant 0 : index
      %c0_10 = arith.constant 0 : index
      %15 = vector.load %arg4[%c0_8, %c0_9, %c0_10] : memref<1x8x16xbf16, #tpu.memory_space<vmem>>, vector<1x8x16xbf16>
      %16 = vector.shape_cast %15 : vector<1x8x16xbf16> to vector<8x16xbf16>
      %c0_11 = arith.constant 0 : index
      %c0_12 = arith.constant 0 : index
      %c0_13 = arith.constant 0 : index
      %17 = vector.load %arg5[%c0_11, %c0_12, %c0_13] : memref<1x8x16xbf16, #tpu.memory_space<vmem>>, vector<1x8x16xbf16>
      %18 = vector.shape_cast %17 : vector<1x8x16xbf16> to vector<8x16xbf16>
      %cst = arith.constant dense<0.000000e+00> : vector<8x8xf32>
      %19 = tpu.matmul %14, %16, %cst {dimension_numbers = #tpu.dot_dimension_numbers<[1], [1], [0], [0], [0, 0, 1, 0], [], []>} : vector<8x16xbf16>, vector<8x16xbf16>, vector<8x8xf32> -> vector<8x8xf32>
      %cst_14 = arith.constant 2.500000e-01 : f32
      %20 = vector.broadcast %cst_14 : f32 to vector<8x8xf32>
      %21 = arith.mulf %19, %20 : vector<8x8xf32>
      %22 = tpu.iota {dimensions = array<i32: 0>} : vector<8x8xi32>
      %23 = vector.broadcast %0 : i32 to vector<8x8xi32>
      %24 = arith.addi %23, %22 : vector<8x8xi32>
      %25 = tpu.iota {dimensions = array<i32: 1>} : vector<8x8xi32>
      %26 = vector.broadcast %1 : i32 to vector<8x8xi32>
      %27 = arith.addi %26, %25 : vector<8x8xi32>
      %28 = arith.cmpi sle, %27, %24 : vector<8x8xi32>
      %cst_15 = arith.constant -1.000000e+30 : f32
      %29 = vector.broadcast %cst_15 : f32 to vector<8x8xf32>
      %30 = arith.select %28, %21, %29 : vector<8x8xi1>, vector<8x8xf32>
      %c0_16 = arith.constant 0 : index
      %c0_17 = arith.constant 0 : index
      %31 = vector.load %arg7[%c0_16, %c0_17] : memref<8x1xf32, #tpu.memory_space<vmem>>, vector<8x1xf32>
      %cst_18 = arith.constant dense<0xFF800000> : vector<8xf32>
      %32 = vector.multi_reduction <maximumf>, %30, %cst_18 [1] : vector<8x8xf32> to vector<8xf32>
      %33 = vector.shape_cast %32 : vector<8xf32> to vector<8x1xf32>
      %34 = arith.maximumf %31, %33 : vector<8x1xf32>
      %35 = arith.subf %31, %34 : vector<8x1xf32>
      %36 = math.exp %35 : vector<8x1xf32>
      %37 = vector.broadcast %34 : vector<8x1xf32> to vector<8x8xf32>
      %38 = arith.subf %30, %37 : vector<8x8xf32>
      %39 = math.exp %38 : vector<8x8xf32>
      %c0_19 = arith.constant 0 : index
      %c0_20 = arith.constant 0 : index
      %40 = vector.load %arg8[%c0_19, %c0_20] : memref<8x1xf32, #tpu.memory_space<vmem>>, vector<8x1xf32>
      %41 = arith.mulf %36, %40 : vector<8x1xf32>
      %cst_21 = arith.constant dense<0.000000e+00> : vector<8xf32>
      %42 = vector.multi_reduction <add>, %39, %cst_21 [1] : vector<8x8xf32> to vector<8xf32>
      %43 = vector.shape_cast %42 : vector<8xf32> to vector<8x1xf32>
      %44 = arith.addf %41, %43 : vector<8x1xf32>
      %c0_22 = arith.constant 0 : index
      %c0_23 = arith.constant 0 : index
      %45 = vector.load %arg8[%c0_22, %c0_23] : memref<8x1xf32, #tpu.memory_space<vmem>>, vector<8x1xf32>
      tpu.vector_store %arg8[%c0_22, %c0_23], %44 {strides = array<i32>} : memref<8x1xf32, #tpu.memory_space<vmem>>, vector<8x1xf32>,
      %c0_24 = arith.constant 0 : index
      %c0_25 = arith.constant 0 : index
      %46 = vector.load %arg9[%c0_24, %c0_25] : memref<8x16xf32, #tpu.memory_space<vmem>>, vector<8x16xf32>
      %47 = vector.broadcast %36 : vector<8x1xf32> to vector<8x16xf32>
      %48 = arith.mulf %47, %46 : vector<8x16xf32>
      %49 = arith.truncf %39 : vector<8x8xf32> to vector<8x8xbf16>
      %cst_26 = arith.constant dense<0.000000e+00> : vector<8x16xf32>
      %50 = tpu.matmul %49, %18, %cst_26 {dimension_numbers = #tpu.dot_dimension_numbers<[1], [0], [0], [1], [0, 0, 1, 1], [], []>} : vector<8x8xbf16>, vector<8x16xbf16>, vector<8x16xf32> -> vector<8x16xf32>
      %51 = arith.addf %48, %50 : vector<8x16xf32>
      %c0_27 = arith.constant 0 : index
      %c0_28 = arith.constant 0 : index
      %52 = vector.load %arg9[%c0_27, %c0_28] : memref<8x16xf32, #tpu.memory_space<vmem>>, vector<8x16xf32>
      tpu.vector_store %arg9[%c0_27, %c0_28], %51 {strides = array<i32>} : memref<8x16xf32, #tpu.memory_space<vmem>>, vector<8x16xf32>,
      %c0_29 = arith.constant 0 : index
      %c0_30 = arith.constant 0 : index
      %53 = vector.load %arg7[%c0_29, %c0_30] : memref<8x1xf32, #tpu.memory_space<vmem>>, vector<8x1xf32>
      tpu.vector_store %arg7[%c0_29, %c0_30], %34 {strides = array<i32>} : memref<8x1xf32, #tpu.memory_space<vmem>>, vector<8x1xf32>,
    } else {
    }
    %c0_i32_4 = arith.constant 0 : i32
    %10 = arith.cmpi eq, %arg2, %c0_i32_4 : i32
    %11 = arith.extui %10 : i1 to i32
    %c0_i32_5 = arith.constant 0 : i32
    %12 = arith.cmpi ne, %11, %c0_i32_5 : i32
    scf.if %12 {
      %c0 = arith.constant 0 : index
      %c0_6 = arith.constant 0 : index
      %13 = vector.load %arg8[%c0, %c0_6] : memref<8x1xf32, #tpu.memory_space<vmem>>, vector<8x1xf32>
      %14 = tpu.reciprocal %13 {approx = true} : vector<8x1xf32> -> vector<8x1xf32>
      %c0_7 = arith.constant 0 : index
      %c0_8 = arith.constant 0 : index
      %15 = vector.load %arg9[%c0_7, %c0_8] : memref<8x16xf32, #tpu.memory_space<vmem>>, vector<8x16xf32>
      %16 = vector.broadcast %14 : vector<8x1xf32> to vector<8x16xf32>
      %17 = arith.mulf %15, %16 : vector<8x16xf32>
      %18 = arith.truncf %17 : vector<8x16xf32> to vector<8x16xbf16>
      %c0_9 = arith.constant 0 : index
      %c0_10 = arith.constant 0 : index
      %c0_11 = arith.constant 0 : index
      %19 = vector.load %arg6[%c0_9, %c0_10, %c0_11] : memref<1x8x16xbf16, #tpu.memory_space<vmem>>, vector<1x8x16xbf16>
      %20 = vector.shape_cast %19 : vector<1x8x16xbf16> to vector<8x16xbf16>
      %21 = vector.shape_cast %18 : vector<8x16xbf16> to vector<1x8x16xbf16>
      tpu.vector_store %arg6[%c0_9, %c0_10, %c0_11], %21 {strides = array<i32>} : memref<1x8x16xbf16, #tpu.memory_space<vmem>>, vector<1x8x16xbf16>,
    } else {
    }
    return
  }
  func.func @transform_0(%arg0: i32, %arg1: i32, %arg2: i32) -> (i32, i32, i32) {
    %c0_i32 = arith.constant 0 : i32
    %c0_i32_0 = arith.constant 0 : i32
    return %arg0, %arg1, %c0_i32 : i32, i32, i32
  }
  func.func @transform_1(%arg0: i32, %arg1: i32, %arg2: i32) -> (i32, i32, i32) {
    %c0_i32 = arith.constant 0 : i32
    %c0_i32_0 = arith.constant 0 : i32
    return %arg0, %arg2, %c0_i32 : i32, i32, i32
  }
  func.func @transform_2(%arg0: i32, %arg1: i32, %arg2: i32) -> (i32, i32, i32) {
    %c0_i32 = arith.constant 0 : i32
    %c0_i32_0 = arith.constant 0 : i32
    return %arg0, %arg2, %c0_i32 : i32, i32, i32
  }
  func.func @transform_3(%arg0: i32, %arg1: i32, %arg2: i32) -> (i32, i32, i32) {
    %c0_i32 = arith.constant 0 : i32
    %c0_i32_0 = arith.constant 0 : i32
    return %arg0, %arg1, %c0_i32 : i32, i32, i32
  }
}

module attributes {stable_mosaic.version = 11 : i64} {
  func.func @_linear_kernel(%arg0: i32, %arg1: i32, %arg2: i32, %arg3: memref<16x64xbf16, #tpu.memory_space<vmem>>, %arg4: memref<64x256xbf16, #tpu.memory_space<vmem>>, %arg5: memref<1x256xf32, #tpu.memory_space<vmem>>, %arg6: memref<16x256xbf16, #tpu.memory_space<vmem>>, %arg7: memref<16x256xf32, #tpu.memory_space<vmem>>) attributes {dimension_semantics = [#tpu.dimension_semantics<parallel>, #tpu.dimension_semantics<parallel>, #tpu.dimension_semantics<arbitrary>], iteration_bounds = array<i64: 1, 1, 1>, scalar_prefetch = 0 : i64, scratch_operands = 1 : i64, tpu.core_type = #tpu.core_type<tc>, window_params = [{transform_indices = @transform_0, window_bounds = array<i64: 16, 64>}, {transform_indices = @transform_1, window_bounds = array<i64: 64, 256>}, {transform_indices = @transform_2, window_bounds = array<i64: 1, 256>}, {transform_indices = @transform_3, window_bounds = array<i64: 16, 256>}]} {
    %c0_i32 = arith.constant 0 : i32
    %0 = arith.cmpi eq, %arg2, %c0_i32 : i32
    %1 = arith.extui %0 : i1 to i32
    %c0_i32_0 = arith.constant 0 : i32
    %2 = arith.cmpi ne, %1, %c0_i32_0 : i32
    scf.if %2 {
      %cst_10 = arith.constant 0.000000e+00 : f32
      %12 = vector.broadcast %cst_10 : f32 to vector<16x256xf32>
      %c0_11 = arith.constant 0 : index
      %c0_12 = arith.constant 0 : index
      %13 = vector.load %arg7[%c0_11, %c0_12] : memref<16x256xf32, #tpu.memory_space<vmem>>, vector<16x256xf32>
      tpu.vector_store %arg7[%c0_11, %c0_12], %12 {strides = array<i32>} : memref<16x256xf32, #tpu.memory_space<vmem>>, vector<16x256xf32>,
    } else {
    }
    %c0 = arith.constant 0 : index
    %c0_1 = arith.constant 0 : index
    %3 = vector.load %arg3[%c0, %c0_1] : memref<16x64xbf16, #tpu.memory_space<vmem>>, vector<16x64xbf16>
    %c0_2 = arith.constant 0 : index
    %c0_3 = arith.constant 0 : index
    %4 = vector.load %arg4[%c0_2, %c0_3] : memref<64x256xbf16, #tpu.memory_space<vmem>>, vector<64x256xbf16>
    %c0_4 = arith.constant 0 : index
    %c0_5 = arith.constant 0 : index
    %5 = vector.load %arg7[%c0_4, %c0_5] : memref<16x256xf32, #tpu.memory_space<vmem>>, vector<16x256xf32>
    %cst = arith.constant dense<0.000000e+00> : vector<16x256xf32>
    %6 = tpu.matmul %3, %4, %cst {dimension_numbers = #tpu.dot_dimension_numbers<[1], [0], [0], [1], [0, 0, 1, 1], [], []>} : vector<16x64xbf16>, vector<64x256xbf16>, vector<16x256xf32> -> vector<16x256xf32>
    %7 = arith.addf %5, %6 : vector<16x256xf32>
    %c0_6 = arith.constant 0 : index
    %c0_7 = arith.constant 0 : index
    %8 = vector.load %arg7[%c0_6, %c0_7] : memref<16x256xf32, #tpu.memory_space<vmem>>, vector<16x256xf32>
    tpu.vector_store %arg7[%c0_6, %c0_7], %7 {strides = array<i32>} : memref<16x256xf32, #tpu.memory_space<vmem>>, vector<16x256xf32>,
    %c0_i32_8 = arith.constant 0 : i32
    %9 = arith.cmpi eq, %arg2, %c0_i32_8 : i32
    %10 = arith.extui %9 : i1 to i32
    %c0_i32_9 = arith.constant 0 : i32
    %11 = arith.cmpi ne, %10, %c0_i32_9 : i32
    scf.if %11 {
      %c0_10 = arith.constant 0 : index
      %c0_11 = arith.constant 0 : index
      %12 = vector.load %arg7[%c0_10, %c0_11] : memref<16x256xf32, #tpu.memory_space<vmem>>, vector<16x256xf32>
      %c0_12 = arith.constant 0 : index
      %c0_13 = arith.constant 0 : index
      %13 = vector.load %arg5[%c0_12, %c0_13] : memref<1x256xf32, #tpu.memory_space<vmem>>, vector<1x256xf32>
      %14 = vector.broadcast %13 : vector<1x256xf32> to vector<16x256xf32>
      %15 = arith.addf %12, %14 : vector<16x256xf32>
      %cst_14 = arith.constant 5.000000e-01 : f32
      %16 = vector.broadcast %cst_14 : f32 to vector<16x256xf32>
      %17 = arith.mulf %16, %15 : vector<16x256xf32>
      %cst_15 = arith.constant 0.707106769 : f32
      %18 = vector.broadcast %cst_15 : f32 to vector<16x256xf32>
      %19 = arith.mulf %15, %18 : vector<16x256xf32>
      %20 = math.erf %19 : vector<16x256xf32>
      %cst_16 = arith.constant 1.000000e+00 : f32
      %21 = vector.broadcast %cst_16 : f32 to vector<16x256xf32>
      %22 = arith.addf %21, %20 : vector<16x256xf32>
      %23 = arith.mulf %17, %22 : vector<16x256xf32>
      %24 = arith.truncf %23 : vector<16x256xf32> to vector<16x256xbf16>
      %c0_17 = arith.constant 0 : index
      %c0_18 = arith.constant 0 : index
      %25 = vector.load %arg6[%c0_17, %c0_18] : memref<16x256xbf16, #tpu.memory_space<vmem>>, vector<16x256xbf16>
      tpu.vector_store %arg6[%c0_17, %c0_18], %24 {strides = array<i32>} : memref<16x256xbf16, #tpu.memory_space<vmem>>, vector<16x256xbf16>,
    } else {
    }
    return
  }
  func.func @transform_0(%arg0: i32, %arg1: i32, %arg2: i32) -> (i32, i32) {
    %c0_i32 = arith.constant 0 : i32
    return %arg0, %arg2 : i32, i32
  }
  func.func @transform_1(%arg0: i32, %arg1: i32, %arg2: i32) -> (i32, i32) {
    %c0_i32 = arith.constant 0 : i32
    return %arg2, %arg1 : i32, i32
  }
  func.func @transform_2(%arg0: i32, %arg1: i32, %arg2: i32) -> (i32, i32) {
    %c0_i32 = arith.constant 0 : i32
    %c0_i32_0 = arith.constant 0 : i32
    return %c0_i32, %arg1 : i32, i32
  }
  func.func @transform_3(%arg0: i32, %arg1: i32, %arg2: i32) -> (i32, i32) {
    %c0_i32 = arith.constant 0 : i32
    return %arg0, %arg1 : i32, i32
  }
}

module attributes {stable_mosaic.version = 11 : i64} {
  func.func @_layernorm_kernel(%arg0: i32, %arg1: memref<16x64xf32, #tpu.memory_space<vmem>>, %arg2: memref<1x64xf32, #tpu.memory_space<vmem>>, %arg3: memref<1x64xf32, #tpu.memory_space<vmem>>, %arg4: memref<16x64xbf16, #tpu.memory_space<vmem>>) attributes {dimension_semantics = [#tpu.dimension_semantics<parallel>], iteration_bounds = array<i64: 1>, scalar_prefetch = 0 : i64, scratch_operands = 0 : i64, tpu.core_type = #tpu.core_type<tc>, window_params = [{transform_indices = @transform_0, window_bounds = array<i64: 16, 64>}, {pipeline_mode = #tpu.pipeline_mode<synchronous>, transform_indices = @transform_1, window_bounds = array<i64: 1, 64>}, {pipeline_mode = #tpu.pipeline_mode<synchronous>, transform_indices = @transform_2, window_bounds = array<i64: 1, 64>}, {transform_indices = @transform_3, window_bounds = array<i64: 16, 64>}]} {
    %c0 = arith.constant 0 : index
    %c0_0 = arith.constant 0 : index
    %0 = vector.load %arg1[%c0, %c0_0] : memref<16x64xf32, #tpu.memory_space<vmem>>, vector<16x64xf32>
    %cst = arith.constant dense<0.000000e+00> : vector<16xf32>
    %1 = vector.multi_reduction <add>, %0, %cst [1] : vector<16x64xf32> to vector<16xf32>
    %2 = vector.shape_cast %1 : vector<16xf32> to vector<16x1xf32>
    %cst_1 = arith.constant 6.400000e+01 : f32
    %3 = vector.broadcast %cst_1 : f32 to vector<16x1xf32>
    %4 = arith.divf %2, %3 : vector<16x1xf32>
    %5 = vector.broadcast %4 : vector<16x1xf32> to vector<16x64xf32>
    %6 = arith.subf %0, %5 : vector<16x64xf32>
    %7 = arith.mulf %6, %6 : vector<16x64xf32>
    %cst_2 = arith.constant dense<0.000000e+00> : vector<16xf32>
    %8 = vector.multi_reduction <add>, %7, %cst_2 [1] : vector<16x64xf32> to vector<16xf32>
    %9 = vector.shape_cast %8 : vector<16xf32> to vector<16x1xf32>
    %cst_3 = arith.constant 6.400000e+01 : f32
    %10 = vector.broadcast %cst_3 : f32 to vector<16x1xf32>
    %11 = arith.divf %9, %10 : vector<16x1xf32>
    %cst_4 = arith.constant 9.99999974E-6 : f32
    %12 = vector.broadcast %cst_4 : f32 to vector<16x1xf32>
    %13 = arith.addf %11, %12 : vector<16x1xf32>
    %14 = math.rsqrt %13 : vector<16x1xf32>
    %15 = vector.broadcast %14 : vector<16x1xf32> to vector<16x64xf32>
    %16 = arith.mulf %6, %15 : vector<16x64xf32>
    %c0_5 = arith.constant 0 : index
    %c0_6 = arith.constant 0 : index
    %17 = vector.load %arg2[%c0_5, %c0_6] : memref<1x64xf32, #tpu.memory_space<vmem>>, vector<1x64xf32>
    %18 = vector.broadcast %17 : vector<1x64xf32> to vector<16x64xf32>
    %19 = arith.mulf %16, %18 : vector<16x64xf32>
    %c0_7 = arith.constant 0 : index
    %c0_8 = arith.constant 0 : index
    %20 = vector.load %arg3[%c0_7, %c0_8] : memref<1x64xf32, #tpu.memory_space<vmem>>, vector<1x64xf32>
    %21 = vector.broadcast %20 : vector<1x64xf32> to vector<16x64xf32>
    %22 = arith.addf %19, %21 : vector<16x64xf32>
    %23 = arith.truncf %22 : vector<16x64xf32> to vector<16x64xbf16>
    %c0_9 = arith.constant 0 : index
    %c0_10 = arith.constant 0 : index
    %24 = vector.load %arg4[%c0_9, %c0_10] : memref<16x64xbf16, #tpu.memory_space<vmem>>, vector<16x64xbf16>
    tpu.vector_store %arg4[%c0_9, %c0_10], %23 {strides = array<i32>} : memref<16x64xbf16, #tpu.memory_space<vmem>>, vector<16x64xbf16>,
    return
  }
  func.func @transform_0(%arg0: i32) -> (i32, i32) {
    %c0_i32 = arith.constant 0 : i32
    %c0_i32_0 = arith.constant 0 : i32
    return %arg0, %c0_i32 : i32, i32
  }
  func.func @transform_1(%arg0: i32) -> (i32, i32) {
    %c0_i32 = arith.constant 0 : i32
    %c0_i32_0 = arith.constant 0 : i32
    %c0_i32_1 = arith.constant 0 : i32
    return %c0_i32, %c0_i32_0 : i32, i32
  }
  func.func @transform_2(%arg0: i32) -> (i32, i32) {
    %c0_i32 = arith.constant 0 : i32
    %c0_i32_0 = arith.constant 0 : i32
    %c0_i32_1 = arith.constant 0 : i32
    return %c0_i32, %c0_i32_0 : i32, i32
  }
  func.func @transform_3(%arg0: i32) -> (i32, i32) {
    %c0_i32 = arith.constant 0 : i32
    %c0_i32_0 = arith.constant 0 : i32
    return %arg0, %c0_i32 : i32, i32
  }
}

module attributes {stable_mosaic.version = 11 : i64} {
  func.func @_linear_kernel(%arg0: i32, %arg1: i32, %arg2: i32, %arg3: memref<16x64xbf16, #tpu.memory_space<vmem>>, %arg4: memref<64x64xbf16, #tpu.memory_space<vmem>>, %arg5: memref<1x64xf32, #tpu.memory_space<vmem>>, %arg6: memref<16x64xf32, #tpu.memory_space<vmem>>, %arg7: memref<16x64xf32, #tpu.memory_space<vmem>>, %arg8: memref<16x64xf32, #tpu.memory_space<vmem>>) attributes {dimension_semantics = [#tpu.dimension_semantics<parallel>, #tpu.dimension_semantics<parallel>, #tpu.dimension_semantics<arbitrary>], iteration_bounds = array<i64: 1, 1, 1>, scalar_prefetch = 0 : i64, scratch_operands = 1 : i64, tpu.core_type = #tpu.core_type<tc>, window_params = [{transform_indices = @transform_0, window_bounds = array<i64: 16, 64>}, {transform_indices = @transform_1, window_bounds = array<i64: 64, 64>}, {transform_indices = @transform_2, window_bounds = array<i64: 1, 64>}, {transform_indices = @transform_3, window_bounds = array<i64: 16, 64>}, {transform_indices = @transform_4, window_bounds = array<i64: 16, 64>}]} {
    %c0_i32 = arith.constant 0 : i32
    %0 = arith.cmpi eq, %arg2, %c0_i32 : i32
    %1 = arith.extui %0 : i1 to i32
    %c0_i32_0 = arith.constant 0 : i32
    %2 = arith.cmpi ne, %1, %c0_i32_0 : i32
    scf.if %2 {
      %cst_10 = arith.constant 0.000000e+00 : f32
      %12 = vector.broadcast %cst_10 : f32 to vector<16x64xf32>
      %c0_11 = arith.constant 0 : index
      %c0_12 = arith.constant 0 : index
      %13 = vector.load %arg8[%c0_11, %c0_12] : memref<16x64xf32, #tpu.memory_space<vmem>>, vector<16x64xf32>
      tpu.vector_store %arg8[%c0_11, %c0_12], %12 {strides = array<i32>} : memref<16x64xf32, #tpu.memory_space<vmem>>, vector<16x64xf32>,
    } else {
    }
    %c0 = arith.constant 0 : index
    %c0_1 = arith.constant 0 : index
    %3 = vector.load %arg3[%c0, %c0_1] : memref<16x64xbf16, #tpu.memory_space<vmem>>, vector<16x64xbf16>
    %c0_2 = arith.constant 0 : index
    %c0_3 = arith.constant 0 : index
    %4 = vector.load %arg4[%c0_2, %c0_3] : memref<64x64xbf16, #tpu.memory_space<vmem>>, vector<64x64xbf16>
    %c0_4 = arith.constant 0 : index
    %c0_5 = arith.constant 0 : index
    %5 = vector.load %arg8[%c0_4, %c0_5] : memref<16x64xf32, #tpu.memory_space<vmem>>, vector<16x64xf32>
    %cst = arith.constant dense<0.000000e+00> : vector<16x64xf32>
    %6 = tpu.matmul %3, %4, %cst {dimension_numbers = #tpu.dot_dimension_numbers<[1], [0], [0], [1], [0, 0, 1, 1], [], []>} : vector<16x64xbf16>, vector<64x64xbf16>, vector<16x64xf32> -> vector<16x64xf32>
    %7 = arith.addf %5, %6 : vector<16x64xf32>
    %c0_6 = arith.constant 0 : index
    %c0_7 = arith.constant 0 : index
    %8 = vector.load %arg8[%c0_6, %c0_7] : memref<16x64xf32, #tpu.memory_space<vmem>>, vector<16x64xf32>
    tpu.vector_store %arg8[%c0_6, %c0_7], %7 {strides = array<i32>} : memref<16x64xf32, #tpu.memory_space<vmem>>, vector<16x64xf32>,
    %c0_i32_8 = arith.constant 0 : i32
    %9 = arith.cmpi eq, %arg2, %c0_i32_8 : i32
    %10 = arith.extui %9 : i1 to i32
    %c0_i32_9 = arith.constant 0 : i32
    %11 = arith.cmpi ne, %10, %c0_i32_9 : i32
    scf.if %11 {
      %c0_10 = arith.constant 0 : index
      %c0_11 = arith.constant 0 : index
      %12 = vector.load %arg8[%c0_10, %c0_11] : memref<16x64xf32, #tpu.memory_space<vmem>>, vector<16x64xf32>
      %c0_12 = arith.constant 0 : index
      %c0_13 = arith.constant 0 : index
      %13 = vector.load %arg5[%c0_12, %c0_13] : memref<1x64xf32, #tpu.memory_space<vmem>>, vector<1x64xf32>
      %14 = vector.broadcast %13 : vector<1x64xf32> to vector<16x64xf32>
      %15 = arith.addf %12, %14 : vector<16x64xf32>
      %c0_14 = arith.constant 0 : index
      %c0_15 = arith.constant 0 : index
      %16 = vector.load %arg6[%c0_14, %c0_15] : memref<16x64xf32, #tpu.memory_space<vmem>>, vector<16x64xf32>
      %17 = arith.addf %15, %16 : vector<16x64xf32>
      %c0_16 = arith.constant 0 : index
      %c0_17 = arith.constant 0 : index
      %18 = vector.load %arg7[%c0_16, %c0_17] : memref<16x64xf32, #tpu.memory_space<vmem>>, vector<16x64xf32>
      tpu.vector_store %arg7[%c0_16, %c0_17], %17 {strides = array<i32>} : memref<16x64xf32, #tpu.memory_space<vmem>>, vector<16x64xf32>,
    } else {
    }
    return
  }
  func.func @transform_0(%arg0: i32, %arg1: i32, %arg2: i32) -> (i32, i32) {
    %c0_i32 = arith.constant 0 : i32
    return %arg0, %arg2 : i32, i32
  }
  func.func @transform_1(%arg0: i32, %arg1: i32, %arg2: i32) -> (i32, i32) {
    %c0_i32 = arith.constant 0 : i32
    return %arg2, %arg1 : i32, i32
  }
  func.func @transform_2(%arg0: i32, %arg1: i32, %arg2: i32) -> (i32, i32) {
    %c0_i32 = arith.constant 0 : i32
    %c0_i32_0 = arith.constant 0 : i32
    return %c0_i32, %arg1 : i32, i32
  }
  func.func @transform_3(%arg0: i32, %arg1: i32, %arg2: i32) -> (i32, i32) {
    %c0_i32 = arith.constant 0 : i32
    return %arg0, %arg1 : i32, i32
  }
  func.func @transform_4(%arg0: i32, %arg1: i32, %arg2: i32) -> (i32, i32) {
    %c0_i32 = arith.constant 0 : i32
    return %arg0, %arg1 : i32, i32
  }
}

module attributes {stable_mosaic.version = 11 : i64} {
  func.func @_linear_kernel(%arg0: i32, %arg1: i32, %arg2: i32, %arg3: memref<16x256xbf16, #tpu.memory_space<vmem>>, %arg4: memref<256x64xbf16, #tpu.memory_space<vmem>>, %arg5: memref<1x64xf32, #tpu.memory_space<vmem>>, %arg6: memref<16x64xf32, #tpu.memory_space<vmem>>, %arg7: memref<16x64xf32, #tpu.memory_space<vmem>>, %arg8: memref<16x64xf32, #tpu.memory_space<vmem>>) attributes {dimension_semantics = [#tpu.dimension_semantics<parallel>, #tpu.dimension_semantics<parallel>, #tpu.dimension_semantics<arbitrary>], iteration_bounds = array<i64: 1, 1, 1>, scalar_prefetch = 0 : i64, scratch_operands = 1 : i64, tpu.core_type = #tpu.core_type<tc>, window_params = [{transform_indices = @transform_0, window_bounds = array<i64: 16, 256>}, {transform_indices = @transform_1, window_bounds = array<i64: 256, 64>}, {transform_indices = @transform_2, window_bounds = array<i64: 1, 64>}, {transform_indices = @transform_3, window_bounds = array<i64: 16, 64>}, {transform_indices = @transform_4, window_bounds = array<i64: 16, 64>}]} {
    %c0_i32 = arith.constant 0 : i32
    %0 = arith.cmpi eq, %arg2, %c0_i32 : i32
    %1 = arith.extui %0 : i1 to i32
    %c0_i32_0 = arith.constant 0 : i32
    %2 = arith.cmpi ne, %1, %c0_i32_0 : i32
    scf.if %2 {
      %cst_10 = arith.constant 0.000000e+00 : f32
      %12 = vector.broadcast %cst_10 : f32 to vector<16x64xf32>
      %c0_11 = arith.constant 0 : index
      %c0_12 = arith.constant 0 : index
      %13 = vector.load %arg8[%c0_11, %c0_12] : memref<16x64xf32, #tpu.memory_space<vmem>>, vector<16x64xf32>
      tpu.vector_store %arg8[%c0_11, %c0_12], %12 {strides = array<i32>} : memref<16x64xf32, #tpu.memory_space<vmem>>, vector<16x64xf32>,
    } else {
    }
    %c0 = arith.constant 0 : index
    %c0_1 = arith.constant 0 : index
    %3 = vector.load %arg3[%c0, %c0_1] : memref<16x256xbf16, #tpu.memory_space<vmem>>, vector<16x256xbf16>
    %c0_2 = arith.constant 0 : index
    %c0_3 = arith.constant 0 : index
    %4 = vector.load %arg4[%c0_2, %c0_3] : memref<256x64xbf16, #tpu.memory_space<vmem>>, vector<256x64xbf16>
    %c0_4 = arith.constant 0 : index
    %c0_5 = arith.constant 0 : index
    %5 = vector.load %arg8[%c0_4, %c0_5] : memref<16x64xf32, #tpu.memory_space<vmem>>, vector<16x64xf32>
    %cst = arith.constant dense<0.000000e+00> : vector<16x64xf32>
    %6 = tpu.matmul %3, %4, %cst {dimension_numbers = #tpu.dot_dimension_numbers<[1], [0], [0], [1], [0, 0, 1, 1], [], []>} : vector<16x256xbf16>, vector<256x64xbf16>, vector<16x64xf32> -> vector<16x64xf32>
    %7 = arith.addf %5, %6 : vector<16x64xf32>
    %c0_6 = arith.constant 0 : index
    %c0_7 = arith.constant 0 : index
    %8 = vector.load %arg8[%c0_6, %c0_7] : memref<16x64xf32, #tpu.memory_space<vmem>>, vector<16x64xf32>
    tpu.vector_store %arg8[%c0_6, %c0_7], %7 {strides = array<i32>} : memref<16x64xf32, #tpu.memory_space<vmem>>, vector<16x64xf32>,
    %c0_i32_8 = arith.constant 0 : i32
    %9 = arith.cmpi eq, %arg2, %c0_i32_8 : i32
    %10 = arith.extui %9 : i1 to i32
    %c0_i32_9 = arith.constant 0 : i32
    %11 = arith.cmpi ne, %10, %c0_i32_9 : i32
    scf.if %11 {
      %c0_10 = arith.constant 0 : index
      %c0_11 = arith.constant 0 : index
      %12 = vector.load %arg8[%c0_10, %c0_11] : memref<16x64xf32, #tpu.memory_space<vmem>>, vector<16x64xf32>
      %c0_12 = arith.constant 0 : index
      %c0_13 = arith.constant 0 : index
      %13 = vector.load %arg5[%c0_12, %c0_13] : memref<1x64xf32, #tpu.memory_space<vmem>>, vector<1x64xf32>
      %14 = vector.broadcast %13 : vector<1x64xf32> to vector<16x64xf32>
      %15 = arith.addf %12, %14 : vector<16x64xf32>
      %c0_14 = arith.constant 0 : index
      %c0_15 = arith.constant 0 : index
      %16 = vector.load %arg6[%c0_14, %c0_15] : memref<16x64xf32, #tpu.memory_space<vmem>>, vector<16x64xf32>
      %17 = arith.addf %15, %16 : vector<16x64xf32>
      %c0_16 = arith.constant 0 : index
      %c0_17 = arith.constant 0 : index
      %18 = vector.load %arg7[%c0_16, %c0_17] : memref<16x64xf32, #tpu.memory_space<vmem>>, vector<16x64xf32>
      tpu.vector_store %arg7[%c0_16, %c0_17], %17 {strides = array<i32>} : memref<16x64xf32, #tpu.memory_space<vmem>>, vector<16x64xf32>,
    } else {
    }
    return
  }
  func.func @transform_0(%arg0: i32, %arg1: i32, %arg2: i32) -> (i32, i32) {
    %c0_i32 = arith.constant 0 : i32
    return %arg0, %arg2 : i32, i32
  }
  func.func @transform_1(%arg0: i32, %arg1: i32, %arg2: i32) -> (i32, i32) {
    %c0_i32 = arith.constant 0 : i32
    return %arg2, %arg1 : i32, i32
  }
  func.func @transform_2(%arg0: i32, %arg1: i32, %arg2: i32) -> (i32, i32) {
    %c0_i32 = arith.constant 0 : i32
    %c0_i32_0 = arith.constant 0 : i32
    return %c0_i32, %arg1 : i32, i32
  }
  func.func @transform_3(%arg0: i32, %arg1: i32, %arg2: i32) -> (i32, i32) {
    %c0_i32 = arith.constant 0 : i32
    return %arg0, %arg1 : i32, i32
  }
  func.func @transform_4(%arg0: i32, %arg1: i32, %arg2: i32) -> (i32, i32) {
    %c0_i32 = arith.constant 0 : i32
    return %arg0, %arg1 : i32, i32
  }
}

</mosaic_0001>

<llo_original>
// kernel: block_forward.7
$region0: #{block_forward.7}
  #allocation0 [shape = 'u32[]', space=smem, size = 0x4, offset = 0x4, fixed_abs, tag = 'smem constant byte address 0x4 - core index']
  #allocation1 [shape = 'u32[144,128]{1,0:T(1,128)}', space=vmem, size = 0x12000, scoped, tag = 'internal scratch']
  %s0 = inlined_call_operand.vmem [shape: f32[16,64], index: 0, kind: input, shape index: {}]
  %s1 = inlined_call_operand.vmem [shape: f32[1,64], index: 1, kind: input, shape index: {}]
  %s2 = inlined_call_operand.hbm [shape: f32[1,64], index: 2, kind: input, shape index: {}]
  %s3 = inlined_call_operand.vmem [shape: bf16[16,64], index: 3, kind: output, shape index: {}]
  %s4 = sld [smem:[#allocation0]]
  $region26: #{block_forward.7} parent=0
    _
  %s6 = ssub.s32 1, %s4
  %s7 = scalar_select 0, %s6, %s4
  $region1: #{block_forward.7} parent=0
    #allocation2 [shape = 'u8[512]{0}', space=vmem, size = 0x400, scoped, tag = 'input window, operand 2, single buffered']
    #allocation3 [shape = 's32[1]{0}', space=sflag, size = 0x4, scoped, tag = 'scoped memory for block_forward.7']
    %8 = vsyncpa [#allocation3], 0
    // Predicated region
    $region2: #{block_forward.7} parent=1 // pred_check
      _
    $region3: #{block_forward.7} parent=1 // pred_check_branch
      %10 = sbr.rel (0) target = $region5
    $region4: #{block_forward.7} parent=1 // pred_region
      _
    $region5: #{block_forward.7} parent=1 // pred_fallthru
      _
    // Predicated region
    $region6: #{block_forward.7} parent=1 // pred_check
      _
    $region7: #{block_forward.7} parent=1 // pred_check_branch
      %12 = sbr.rel (0) target = $region9
    $region8: #{block_forward.7} parent=1 // pred_region
      _
    $region9: #{block_forward.7} parent=1 // pred_fallthru
      _
    // Predicated region
    $region10: #{block_forward.7} parent=1 // pred_check
      _
    $region11: #{block_forward.7} parent=1 // pred_check_branch
      %14 = sbr.rel (0) target = $region13
    $region12: #{block_forward.7} parent=1 // pred_region
      %s16 = ssub.s32 16, 16
      %17 = vsyncadd [#allocation3], %s16
      %s19 = sshll.u32 [#allocation2], 4
      %s20 = int_to_ptr.vmem [resolvable:$true] %s19
      %22 = dma.hbm_to_vmem [thread:$0]  %s2, 16, %s20, [#allocation3]
    $region13: #{block_forward.7} parent=1 // pred_fallthru
      _
    // Predicated region
    $region14: #{block_forward.7} parent=1 // pred_check
      _
    $region15: #{block_forward.7} parent=1 // pred_check_branch
      %24 = sbr.rel (0) target = $region17
    $region16: #{block_forward.7} parent=1 // pred_region
      %25 = dma.done [#allocation3], 16
    $region17: #{block_forward.7} parent=1 // pred_fallthru
      _
    %v26 = vld [vmem:[%s0] sm:$0xff]
    %v27 = vld [vmem:[%s0 + $0x8] sm:$0xff]
    %vm28 = vcmask 523264
    %v29 = vsel %vm28, %v26, 0.0
    %30 = vadd.xlane.f32.xlu0 %v29
    %v31 = vpop.xlane.xlu0 %30
    %v32 = vsel %vm28, %v27, 0.0
    %33 = vadd.xlane.f32.xlu0 %v32
    %v34 = vpop.xlane.xlu0 %33
    %v35 = vrcp.pop 64.0
    %v36 = vmul.f32 %v31, %v35
    %v37 = vmul.f32 %v34, %v35
    %v38 = vsub.f32 %v26, %v36
    %v39 = vsub.f32 %v27, %v37
    %v40 = vmul.f32 %v38, %v38
    %v41 = vmul.f32 %v39, %v39
    %v42 = vsel %vm28, %v40, 0.0
    %43 = vadd.xlane.f32.xlu0 %v42
    %v44 = vpop.xlane.xlu0 %43
    %v45 = vsel %vm28, %v41, 0.0
    %46 = vadd.xlane.f32.xlu0 %v45
    %v47 = vpop.xlane.xlu0 %46
    %v48 = vmul.f32 %v44, %v35
    %v49 = vmul.f32 %v47, %v35
    %v50 = vadd.f32 %v48, 1e-05
    %v51 = vadd.f32 %v49, 1e-05
    %v52 = vrsqrt.pop %v50
    %v53 = vrsqrt.pop %v51
    %v54 = vmul.f32 %v38, %v52
    %v55 = vmul.f32 %v39, %v53
    %v56 = vld [vmem:[%s1] sm:$0x1]
    %v58 = vlaneseq
    %v59 = vshrl.u32 %v58, 7
    %v60 = vsub.s32 0, %v59
    %v61 = vrot.slane %v56, %v60
    %v63 = vmul.f32 %v54, %v61
    %v64 = vmul.f32 %v55, %v61
    %v65 = vld [vmem:[#allocation2] sm:$0x1]
    %v67 = vlaneseq
    %v68 = vshrl.u32 %v67, 7
    %v69 = vsub.s32 0, %v68
    %v70 = vrot.slane %v65, %v69
    %v72 = vadd.f32 %v63, %v70
    %v73 = vadd.f32 %v64, %v70
    %v74 = vpack.c.bf16 %v73, %v72
    %v76 = vunpack.c.l.b16 %v74
    %v77 = vunpack.c.h.b16 %v74
    %v78 = vpack.c.b16 %v76, %v76
    %v79 = vpack.c.b16 %v77, %v77
    %vm82 = vcmask 519168
    %83 = vst.msk [vmem:[%s3] sm:$0xf] %vm82, %v78
    %84 = vst.msk [vmem:[%s3 + $0x4] sm:$0xf] %vm82, %v79
    // Predicated region
    $region18: #{block_forward.7} parent=1 // pred_check
      _
    $region19: #{block_forward.7} parent=1 // pred_check_branch
      %86 = sbr.rel (0) target = $region21
    $region20: #{block_forward.7} parent=1 // pred_region
      _
    $region21: #{block_forward.7} parent=1 // pred_fallthru
      _
    // Predicated region
    $region22: #{block_forward.7} parent=1 // pred_check
      _
    $region23: #{block_forward.7} parent=1 // pred_check_branch
      %88 = sbr.rel (0) target = $region25
    $region24: #{block_forward.7} parent=1 // pred_region
      _
    $region25: #{block_forward.7} parent=1 // pred_fallthru
      _
    %89 = vsyncpa [#allocation3], 1

// kernel: block_forward.8
$region0: #{block_forward.8}
  #allocation0 [shape = 'u32[]', space=smem, size = 0x4, offset = 0x4, fixed_abs, tag = 'smem constant byte address 0x4 - core index']
  #allocation1 [shape = 'u32[144,128]{1,0:T(1,128)}', space=vmem, size = 0x12000, scoped, tag = 'internal scratch']
  #allocation2 [shape = 'f32[16,192]{1,0:T(8,128)}', space=vmem, size = 0x4000, scoped, tag = 'scratch operand']
  %s0 = inlined_call_operand.vmem [shape: bf16[16,64], index: 0, kind: input, shape index: {}]
  %s1 = inlined_call_operand.vmem [shape: bf16[64,192], index: 1, kind: input, shape index: {}]
  %s2 = inlined_call_operand.vmem [shape: f32[1,192], index: 2, kind: input, shape index: {}]
  %s3 = inlined_call_operand.vmem [shape: bf16[16,192], index: 3, kind: output, shape index: {}]
  %s4 = sld [smem:[#allocation0]]
  $region30: #{block_forward.8} parent=0
    _
  %s6 = ssub.s32 1, %s4
  %s7 = scalar_select 0, %s6, %s4
  // Predicated region
  $region2: #{block_forward.8} parent=0 // pred_check
    _
  $region3: #{block_forward.8} parent=0 // pred_check_branch
    %9 = sbr.rel (0) target = $region5
  $region4: #{block_forward.8} parent=0 // pred_region
    _
  $region5: #{block_forward.8} parent=0 // pred_fallthru
    _
  // Predicated region
  $region6: #{block_forward.8} parent=0 // pred_check
    _
  $region7: #{block_forward.8} parent=0 // pred_check_branch
    %11 = sbr.rel (0) target = $region9
  $region8: #{block_forward.8} parent=0 // pred_region
    _
  $region9: #{block_forward.8} parent=0 // pred_fallthru
    _
  // Predicated region
  $region10: #{block_forward.8} parent=0 // pred_check
    _
  $region11: #{block_forward.8} parent=0 // pred_check_branch
    %13 = sbr.rel (0) target = $region13
  $region12: #{block_forward.8} parent=0 // pred_region
    _
  $region13: #{block_forward.8} parent=0 // pred_fallthru
    _
  %p15 = scmp.eq.s32.totalorder 0, 0
  // Predicated region
  $region14: #{block_forward.8} parent=0 // pred_check
    %p16 = pneg %p15
  $region15: #{block_forward.8} parent=0 // pred_check_branch
    %18 = sbr.rel (%p16) target = $region17
  $region16: #{block_forward.8} parent=0 // pred_region
    %19 = vst [vmem:[#allocation2] sm:$0xff] 0.0
    %vm20 = vcmask 523264
    %21 = vst.msk [vmem:[#allocation2 + $0x8] sm:$0xff] %vm20, 0.0
    %22 = vst [vmem:[#allocation2 + $0x10] sm:$0xff] 0.0
    %23 = vst.msk [vmem:[#allocation2 + $0x18] sm:$0xff] %vm20, 0.0
  $region17: #{block_forward.8} parent=0 // pred_fallthru
    _
  %v24 = vld [vmem:[%s0] sm:$0xf]
  %v25 = vld [vmem:[%s0 + $0x4] sm:$0xf]
  %v26 = vld [vmem:[%s1] sm:$0xff]
  %v27 = vld [vmem:[%s1 + $0x8] sm:$0xff]
  %v28 = vld [vmem:[%s1 + $0x10] sm:$0xff]
  %v29 = vld [vmem:[%s1 + $0x18] sm:$0xff]
  %v30 = vld [vmem:[%s1 + $0x20] sm:$0xff]
  %v31 = vld [vmem:[%s1 + $0x28] sm:$0xff]
  %v32 = vld [vmem:[%s1 + $0x30] sm:$0xff]
  %v33 = vld [vmem:[%s1 + $0x38] sm:$0xff]
  %v34 = vld [vmem:[#allocation2] sm:$0xff]
  %v35 = vld [vmem:[#allocation2 + $0x8] sm:$0xff]
  %v36 = vld [vmem:[#allocation2 + $0x10] sm:$0xff]
  %v37 = vld [vmem:[#allocation2 + $0x18] sm:$0xff]
  %v40 = vunpack.c.l.b16 %v24
  %v41 = vunpack.c.l.b16 %v25
  %v42 = vpack.c.b16 %v41, %v40
  %v51 = vunpack.c.l.b16 %v26
  %v52 = vunpack.c.h.b16 %v26
  %v53 = vunpack.c.l.b16 %v27
  %v54 = vunpack.c.h.b16 %v27
  %v55 = vunpack.c.l.b16 %v28
  %v56 = vunpack.c.h.b16 %v28
  %v57 = vunpack.c.l.b16 %v29
  %v58 = vunpack.c.h.b16 %v29
  %v59 = vunpack.c.l.b16 %v30
  %v60 = vunpack.c.h.b16 %v30
  %v61 = vunpack.c.l.b16 %v31
  %v62 = vunpack.c.h.b16 %v31
  %v63 = vunpack.c.l.b16 %v32
  %v64 = vunpack.c.h.b16 %v32
  %v65 = vunpack.c.l.b16 %v33
  %v66 = vunpack.c.h.b16 %v33
  %v67 = vpack.c.b16 %v53, %v51
  %v68 = vpack.c.b16 %v54, %v52
  %v69 = vpack.c.b16 %v57, %v55
  %v70 = vpack.c.b16 %v58, %v56
  %v71 = vpack.c.b16 %v61, %v59
  %v72 = vpack.c.b16 %v62, %v60
  %v73 = vpack.c.b16 %v65, %v63
  %v74 = vpack.c.b16 %v66, %v64
  %vm83 = vcmask 523264
  %v85 = vsel %vm83, %v42, 0
  %87 = vmatprep.subr.bf16.mxu0 %v68
  %88 = vmatpush1.bf16.msra.mxu0 %v67
  %89 = vmatprep.subr.bf16.mxu0 %v70
  %90 = vmatpush1.bf16.msra.mxu0 %v69
  %91 = vmatprep.subr.bf16.mxu0 %v72
  %92 = vmatpush1.bf16.msra.mxu0 %v71
  %93 = vmatprep.subr.bf16.mxu0 %v74
  %94 = vmatpush1.bf16.msra.mxu0 %v73
  %95 = vmatprep.subr.bf16.mxu0 0
  %96 = vmatpush1.bf16.msra.mxu0 0
  %97 = vmatprep.subr.bf16.mxu0 0
  %98 = vmatpush1.bf16.msra.mxu0 0
  %99 = vmatprep.subr.bf16.mxu0 0
  %100 = vmatpush1.bf16.msra.mxu0 0
  %101 = vmatprep.subr.bf16.mxu0 0
  %102 = vmatpush1.bf16.msra.mxu0 0
  %103 = vmatprep.subr.bf16.mxu0 0
  %104 = vmatpush1.bf16.msra.mxu0 0
  %105 = vmatprep.subr.bf16.mxu0 0
  %106 = vmatpush1.bf16.msra.mxu0 0
  %107 = vmatprep.subr.bf16.mxu0 0
  %108 = vmatpush1.bf16.msra.mxu0 0
  %109 = vmatprep.subr.bf16.mxu0 0
  %110 = vmatpush1.bf16.msra.mxu0 0
  %111 = vmatprep.subr.bf16.mxu0 0
  %112 = vmatpush1.bf16.msra.mxu0 0
  %113 = vmatprep.subr.bf16.mxu0 0
  %114 = vmatpush1.bf16.msra.mxu0 0
  %115 = vmatprep.subr.bf16.mxu0 0
  %116 = vmatpush1.bf16.msra.mxu0 0
  %117 = vmatprep.subr.bf16.mxu0 0
  %118 = vmatpush1.bf16.msra.mxu0 0
  %119 = vmatprep.mubr.bf16.mxu0 0
  %120 = vmatmul.mubr.bf16.gmra.mrb[0].mxu0 %v85
  %v121 = vpop.f32.mrb[0].mxu0
  %v122 = vadd.f32 0.0, %v121
  %v123 = vpop.f32.mrb[0].mxu0
  %v124 = vadd.f32 0.0, %v123
  %v125 = vpop.f32.mrb[0].mxu0
  %v126 = vadd.f32 0.0, %v125
  %v127 = vpop.f32.mrb[0].mxu0
  %v128 = vadd.f32 0.0, %v127
  %129 = vdwg.mxu0
  %v130 = vadd.f32 %v34, %v122
  %v131 = vadd.f32 %v35, %v124
  %v132 = vadd.f32 %v36, %v126
  %v133 = vadd.f32 %v37, %v128
  %134 = vst [vmem:[#allocation2] sm:$0xff] %v130
  %135 = vst.msk [vmem:[#allocation2 + $0x8] sm:$0xff] %vm83, %v131
  %136 = vst [vmem:[#allocation2 + $0x10] sm:$0xff] %v132
  %137 = vst.msk [vmem:[#allocation2 + $0x18] sm:$0xff] %vm83, %v133
  // Predicated region
  $region18: #{block_forward.8} parent=0 // pred_check
    %p138 = pneg %p15
  $region19: #{block_forward.8} parent=0 // pred_check_branch
    %140 = sbr.rel (%p138) target = $region21
  $region20: #{block_forward.8} parent=0 // pred_region
    %v141 = vld [vmem:[#allocation2] sm:$0xff]
    %v142 = vld [vmem:[#allocation2 + $0x8] sm:$0xff]
    %v143 = vld [vmem:[#allocation2 + $0x10] sm:$0xff]
    %v144 = vld [vmem:[#allocation2 + $0x18] sm:$0xff]
    %v145 = vld [vmem:[%s2] sm:$0x3]
    %v147 = vlaneseq
    %v148 = vshrl.u32 %v147, 7
    %v149 = vsub.s32 0, %v148
    %v150 = vrot.slane %v145, %v149
    %v151 = vlaneseq
    %v152 = vshrl.u32 %v151, 7
    %v153 = vsub.s32 1, %v152
    %v154 = vrot.slane %v145, %v153
    %v157 = vadd.f32 %v141, %v150
    %v158 = vadd.f32 %v142, %v154
    %v159 = vadd.f32 %v143, %v150
    %v160 = vadd.f32 %v144, %v154
    %v161 = vpack.c.bf16 %v159, %v157
    %v162 = vpack.c.bf16 %v160, %v158
    %v165 = vunpack.c.l.b16 %v161
    %v166 = vunpack.c.l.b16 %v162
    %v167 = vunpack.c.h.b16 %v161
    %v168 = vunpack.c.h.b16 %v162
    %v169 = vpack.c.b16 %v166, %v165
    %v170 = vpack.c.b16 %v168, %v167
    %vm173 = vcmask 1043456
    %vm174 = vcmask 523268
    %vm175 = vmor %vm174, %vm173
    %176 = vst.msk [vmem:[%s3] sm:$0xff] %vm175, %v169
    %177 = vst.msk [vmem:[%s3 + $0x8] sm:$0xff] %vm175, %v170
  $region21: #{block_forward.8} parent=0 // pred_fallthru
    _
  // Predicated region
  $region22: #{block_forward.8} parent=0 // pred_check
    _
  $region23: #{block_forward.8} parent=0 // pred_check_branch
    %179 = sbr.rel (0) target = $region25
  $region24: #{block_forward.8} parent=0 // pred_region
    _
  $region25: #{block_forward.8} parent=0 // pred_fallthru
    _
  // Predicated region
  $region26: #{block_forward.8} parent=0 // pred_check
    _
  $region27: #{block_forward.8} parent=0 // pred_check_branch
    %181 = sbr.rel (0) target = $region29
  $region28: #{block_forward.8} parent=0 // pred_region
    _
  $region29: #{block_forward.8} parent=0 // pred_fallthru
    _

// kernel: block_forward.11
$region0: #{block_forward.11}
  #allocation0 [shape = 'u32[]', space=smem, size = 0x4, offset = 0x4, fixed_abs, tag = 'smem constant byte address 0x4 - core index']
  #allocation1 [shape = 'u32[144,128]{1,0:T(1,128)}', space=vmem, size = 0x12000, scoped, tag = 'internal scratch']
  %s0 = inlined_call_operand.vmem [shape: f32[16,64], index: 0, kind: input, shape index: {}]
  %s1 = inlined_call_operand.vmem [shape: f32[1,64], index: 1, kind: input, shape index: {}]
  %s2 = inlined_call_operand.vmem [shape: f32[1,64], index: 2, kind: input, shape index: {}]
  %s3 = inlined_call_operand.vmem [shape: bf16[16,64], index: 3, kind: output, shape index: {}]
  %s4 = sld [smem:[#allocation0]]
  $region22: #{block_forward.11} parent=0
    _
  %s6 = ssub.s32 1, %s4
  %s7 = scalar_select 0, %s6, %s4
  // Predicated region
  $region2: #{block_forward.11} parent=0 // pred_check
    _
  $region3: #{block_forward.11} parent=0 // pred_check_branch
    %9 = sbr.rel (0) target = $region5
  $region4: #{block_forward.11} parent=0 // pred_region
    _
  $region5: #{block_forward.11} parent=0 // pred_fallthru
    _
  // Predicated region
  $region6: #{block_forward.11} parent=0 // pred_check
    _
  $region7: #{block_forward.11} parent=0 // pred_check_branch
    %11 = sbr.rel (0) target = $region9
  $region8: #{block_forward.11} parent=0 // pred_region
    _
  $region9: #{block_forward.11} parent=0 // pred_fallthru
    _
  // Predicated region
  $region10: #{block_forward.11} parent=0 // pred_check
    _
  $region11: #{block_forward.11} parent=0 // pred_check_branch
    %13 = sbr.rel (0) target = $region13
  $region12: #{block_forward.11} parent=0 // pred_region
    _
  $region13: #{block_forward.11} parent=0 // pred_fallthru
    _
  %v14 = vld [vmem:[%s0] sm:$0xff]
  %v15 = vld [vmem:[%s0 + $0x8] sm:$0xff]
  %vm16 = vcmask 523264
  %v17 = vsel %vm16, %v14, 0.0
  %18 = vadd.xlane.f32.xlu0 %v17
  %v19 = vpop.xlane.xlu0 %18
  %v20 = vsel %vm16, %v15, 0.0
  %21 = vadd.xlane.f32.xlu0 %v20
  %v22 = vpop.xlane.xlu0 %21
  %v23 = vrcp.pop 64.0
  %v24 = vmul.f32 %v19, %v23
  %v25 = vmul.f32 %v22, %v23
  %v26 = vsub.f32 %v14, %v24
  %v27 = vsub.f32 %v15, %v25
  %v28 = vmul.f32 %v26, %v26
  %v29 = vmul.f32 %v27, %v27
  %v30 = vsel %vm16, %v28, 0.0
  %31 = vadd.xlane.f32.xlu0 %v30
  %v32 = vpop.xlane.xlu0 %31
  %v33 = vsel %vm16, %v29, 0.0
  %34 = vadd.xlane.f32.xlu0 %v33
  %v35 = vpop.xlane.xlu0 %34
  %v36 = vmul.f32 %v32, %v23
  %v37 = vmul.f32 %v35, %v23
  %v38 = vadd.f32 %v36, 1e-05
  %v39 = vadd.f32 %v37, 1e-05
  %v40 = vrsqrt.pop %v38
  %v41 = vrsqrt.pop %v39
  %v42 = vmul.f32 %v26, %v40
  %v43 = vmul.f32 %v27, %v41
  %v44 = vld [vmem:[%s1] sm:$0x1]
  %v46 = vlaneseq
  %v47 = vshrl.u32 %v46, 7
  %v48 = vsub.s32 0, %v47
  %v49 = vrot.slane %v44, %v48
  %v51 = vmul.f32 %v42, %v49
  %v52 = vmul.f32 %v43, %v49
  %v53 = vld [vmem:[%s2] sm:$0x1]
  %v55 = vlaneseq
  %v56 = vshrl.u32 %v55, 7
  %v57 = vsub.s32 0, %v56
  %v58 = vrot.slane %v53, %v57
  %v60 = vadd.f32 %v51, %v58
  %v61 = vadd.f32 %v52, %v58
  %v62 = vpack.c.bf16 %v61, %v60
  %v64 = vunpack.c.l.b16 %v62
  %v65 = vunpack.c.h.b16 %v62
  %v66 = vpack.c.b16 %v64, %v64
  %v67 = vpack.c.b16 %v65, %v65
  %vm70 = vcmask 519168
  %71 = vst.msk [vmem:[%s3] sm:$0xf] %vm70, %v66
  %72 = vst.msk [vmem:[%s3 + $0x4] sm:$0xf] %vm70, %v67
  // Predicated region
  $region14: #{block_forward.11} parent=0 // pred_check
    _
  $region15: #{block_forward.11} parent=0 // pred_check_branch
    %74 = sbr.rel (0) target = $region17
  $region16: #{block_forward.11} parent=0 // pred_region
    _
  $region17: #{block_forward.11} parent=0 // pred_fallthru
    _
  // Predicated region
  $region18: #{block_forward.11} parent=0 // pred_check
    _
  $region19: #{block_forward.11} parent=0 // pred_check_branch
    %76 = sbr.rel (0) target = $region21
  $region20: #{block_forward.11} parent=0 // pred_region
    _
  $region21: #{block_forward.11} parent=0 // pred_fallthru
    _

// kernel: block_forward.9
$region0: #{block_forward.9}
  #allocation0 [shape = 'u32[]', space=smem, size = 0x4, offset = 0x4, fixed_abs, tag = 'smem constant byte address 0x4 - core index']
  #allocation1 [shape = 'u32[144,128]{1,0:T(1,128)}', space=vmem, size = 0x12000, scoped, tag = 'internal scratch']
  #allocation2 [shape = 'f32[8,1]{1,0:T(8,128)}', space=vmem, size = 0x1000, scoped, tag = 'scratch operand']
  #allocation3 [shape = 'f32[8,1]{1,0:T(8,128)}', space=vmem, size = 0x1000, scoped, tag = 'scratch operand']
  #allocation4 [shape = 'f32[8,16]{1,0:T(8,128)}', space=vmem, size = 0x1000, scoped, tag = 'scratch operand']
  %s0 = inlined_call_operand.vmem [shape: bf16[8,8,16], index: 0, kind: input, shape index: {}]
  %s1 = inlined_call_operand.vmem [shape: bf16[8,8,16], index: 1, kind: input, shape index: {}]
  %s2 = inlined_call_operand.vmem [shape: bf16[8,8,16], index: 2, kind: input, shape index: {}]
  %s3 = inlined_call_operand.vmem [shape: bf16[8,8,16], index: 3, kind: output, shape index: {}]
  %s4 = sld [smem:[#allocation0]]
  $region57: #{block_forward.9} parent=0
    _
  %s6 = ssub.s32 1, %s4
  %s7 = scalar_select 0, %s6, %s4
  loop: start=0, step=1, limit=10
  $region2: #{block_forward.9} parent=0 // loop_pre_header
    _
  $region3: #{block_forward.9} parent=0 // loop_header
    %s9 = sphi 0, %s13
    %p10 = scmp.ge.s32.totalorder %s9, 10
    %s16 = sphi 0, %s35
    %s17 = sphi 0, %s31
    %s18 = sphi 0, %s27
    %s19 = sphi 0, %s16
    %s20 = sphi 0, %s17
    %s21 = sphi 0, %s18
    %s22 = sphi 0, %s19
    %s23 = sphi 0, %s20
    %s24 = sphi 0, %s21
    %s40 = sphi 0, %s42
    %s43 = sphi 0, %s40
    %s44 = sphi 0, %s43
    %s60 = sphi 0, %s44
    %s68 = sphi 0, %s70
    %s71 = sphi 0, %s68
    %s72 = sphi 0, %s71
    %s88 = sphi 0, %s72
    %s96 = sphi 0, %s98
    %s99 = sphi 0, %s96
    %s100 = sphi 0, %s99
    %s116 = sphi 0, %s100
    %s124 = sphi 0, %s126
    %s127 = sphi 0, %s124
    %s128 = sphi 0, %s127
    %s144 = sphi 0, %s128
  $region4: #{block_forward.9} parent=0 // loop_header_branch
    %12 = sbr.rel (%p10) target = $region8
  $region5: #{block_forward.9} parent=0 // loop_body
    %s14 = ssub.s32 %s9, 1
    %s15 = ssub.s32 %s9, 2
    %s25 = sadd.s32 1, %s18
    %p26 = scmp.ge.s32.totalorder %s25, 1
    %s27 = scalar_select %p26, 0, %s25
    %s28 = sadd.s32 1, %s17
    %s29 = scalar_select %p26, %s28, %s17
    %p30 = scmp.ge.s32.totalorder %s29, 1
    %s31 = scalar_select %p30, 0, %s29
    %s32 = sadd.s32 1, %s16
    %s33 = scalar_select %p30, %s32, %s16
    %p34 = scmp.ge.s32.totalorder %s33, 8
    %s35 = scalar_select %p34, 0, %s33
    %s36 = ssub.s32 %s16, %s35
    %s37 = ssub.s32 %s17, %s31
    %s38 = sor.u32 %s36, %s37
    %p39 = scmp.eq.s32.totalorder %s38, 0
    %s41 = sadd.s32 %s40, 1
    %s42 = scalar_select %p39, %s40, %s41
    %p45 = pneg %p39
    %p46 = scmp.eq.s32.totalorder %s9, 7
    %p47 = por %p45, %p46
    %p48 = scmp.ne.s32.totalorder %s40, %s43
    %p49 = scmp.eq.s32.totalorder %s9, 0
    %p50 = por %p48, %p49
    %p51 = scmp.ne.s32.totalorder %s40, %s43
    %p52 = scmp.eq.s32.totalorder %s14, 7
    %p53 = por %p51, %p52
    %p54 = scmp.ne.s32.totalorder %s43, %s44
    %p55 = scmp.eq.s32.totalorder %s14, 0
    %p56 = por %p54, %p55
    %p57 = scmp.ne.s32.totalorder %s43, %s44
    %p58 = scmp.eq.s32.totalorder %s15, 7
    %p59 = por %p57, %p58
    %p61 = scmp.ne.s32.totalorder %s44, %s60
    %p62 = scmp.eq.s32.totalorder %s15, 0
    %p63 = por %p61, %p62
    %s64 = ssub.s32 %s16, %s35
    %s65 = ssub.s32 %s18, %s27
    %s66 = sor.u32 %s64, %s65
    %p67 = scmp.eq.s32.totalorder %s66, 0
    %s69 = sadd.s32 %s68, 1
    %s70 = scalar_select %p67, %s68, %s69
    %p73 = pneg %p67
    %p74 = scmp.eq.s32.totalorder %s9, 7
    %p75 = por %p73, %p74
    %p76 = scmp.ne.s32.totalorder %s68, %s71
    %p77 = scmp.eq.s32.totalorder %s9, 0
    %p78 = por %p76, %p77
    %p79 = scmp.ne.s32.totalorder %s68, %s71
    %p80 = scmp.eq.s32.totalorder %s14, 7
    %p81 = por %p79, %p80
    %p82 = scmp.ne.s32.totalorder %s71, %s72
    %p83 = scmp.eq.s32.totalorder %s14, 0
    %p84 = por %p82, %p83
    %p85 = scmp.ne.s32.totalorder %s71, %s72
    %p86 = scmp.eq.s32.totalorder %s15, 7
    %p87 = por %p85, %p86
    %p89 = scmp.ne.s32.totalorder %s72, %s88
    %p90 = scmp.eq.s32.totalorder %s15, 0
    %p91 = por %p89, %p90
    %s92 = ssub.s32 %s16, %s35
    %s93 = ssub.s32 %s18, %s27
    %s94 = sor.u32 %s92, %s93
    %p95 = scmp.eq.s32.totalorder %s94, 0
    %s97 = sadd.s32 %s96, 1
    %s98 = scalar_select %p95, %s96, %s97
    %p101 = pneg %p95
    %p102 = scmp.eq.s32.totalorder %s9, 7
    %p103 = por %p101, %p102
    %p104 = scmp.ne.s32.totalorder %s96, %s99
    %p105 = scmp.eq.s32.totalorder %s9, 0
    %p106 = por %p104, %p105
    %p107 = scmp.ne.s32.totalorder %s96, %s99
    %p108 = scmp.eq.s32.totalorder %s14, 7
    %p109 = por %p107, %p108
    %p110 = scmp.ne.s32.totalorder %s99, %s100
    %p111 = scmp.eq.s32.totalorder %s14, 0
    %p112 = por %p110, %p111
    %p113 = scmp.ne.s32.totalorder %s99, %s100
    %p114 = scmp.eq.s32.totalorder %s15, 7
    %p115 = por %p113, %p114
    %p117 = scmp.ne.s32.totalorder %s100, %s116
    %p118 = scmp.eq.s32.totalorder %s15, 0
    %p119 = por %p117, %p118
    %s120 = ssub.s32 %s16, %s35
    %s121 = ssub.s32 %s17, %s31
    %s122 = sor.u32 %s120, %s121
    %p123 = scmp.eq.s32.totalorder %s122, 0
    %s125 = sadd.s32 %s124, 1
    %s126 = scalar_select %p123, %s124, %s125
    %p129 = pneg %p123
    %p130 = scmp.eq.s32.totalorder %s9, 7
    %p131 = por %p129, %p130
    %p132 = scmp.ne.s32.totalorder %s124, %s127
    %p133 = scmp.eq.s32.totalorder %s9, 0
    %p134 = por %p132, %p133
    %p135 = scmp.ne.s32.totalorder %s124, %s127
    %p136 = scmp.eq.s32.totalorder %s14, 7
    %p137 = por %p135, %p136
    %p138 = scmp.ne.s32.totalorder %s127, %s128
    %p139 = scmp.eq.s32.totalorder %s14, 0
    %p140 = por %p138, %p139
    %p141 = scmp.ne.s32.totalorder %s127, %s128
    %p142 = scmp.eq.s32.totalorder %s15, 7
    %p143 = por %p141, %p142
    %p145 = scmp.ne.s32.totalorder %s128, %s144
    %p146 = scmp.eq.s32.totalorder %s15, 0
    %p147 = por %p145, %p146
    %p148 = scmp.le.s32.totalorder 1, %s9
    %p149 = scmp.lt.s32.totalorder %s9, 9
    %p150 = pnand %p148, %p149
    %p151 = pneg %p150
    // Predicated region
    $region9: #{block_forward.9} parent=5 // pred_check
      _
    $region10: #{block_forward.9} parent=5 // pred_check_branch
      %153 = sbr.rel (%p150) target = $region12
    $region11: #{block_forward.9} parent=5 // pred_region
      %s154 = ssub.s32 %s9, 1
    $region12: #{block_forward.9} parent=5 // pred_fallthru
      _
    %p155 = scmp.lt.s32.totalorder %s9, 8
    // Predicated region
    $region13: #{block_forward.9} parent=5 // pred_check
      %p156 = pneg %p155
    $region14: #{block_forward.9} parent=5 // pred_check_branch
      %158 = sbr.rel (%p156) target = $region16
    $region15: #{block_forward.9} parent=5 // pred_region
      // Predicated region
      $region17: #{block_forward.9} parent=15 // pred_check
        %p159 = pneg %p50
      $region18: #{block_forward.9} parent=15 // pred_check_branch
        %161 = sbr.rel (%p159) target = $region20
      $region19: #{block_forward.9} parent=15 // pred_region
        %p162 = scmp.lt.s32.totalorder %s16, 7
        %s163 = scalar_select %p162, %s16, 7
        %p164 = scmp.lt.s32.totalorder %s17, 0
        %s165 = scalar_select %p164, %s17, 0
        %s166 = sadd.s32 %s165, %s163
        %s167 = smul.addr %s166, 4
        %s168 = scalar_lea.vmem %s0, %s167
      $region20: #{block_forward.9} parent=15 // pred_fallthru
        _
      // Predicated region
      $region21: #{block_forward.9} parent=15 // pred_check
        %p169 = pneg %p78
      $region22: #{block_forward.9} parent=15 // pred_check_branch
        %171 = sbr.rel (%p169) target = $region24
      $region23: #{block_forward.9} parent=15 // pred_region
        %p172 = scmp.lt.s32.totalorder %s16, 7
        %s173 = scalar_select %p172, %s16, 7
        %p174 = scmp.lt.s32.totalorder %s18, 0
        %s175 = scalar_select %p174, %s18, 0
        %s176 = sadd.s32 %s175, %s173
        %s177 = smul.addr %s176, 4
        %s178 = scalar_lea.vmem %s1, %s177
      $region24: #{block_forward.9} parent=15 // pred_fallthru
        _
      // Predicated region
      $region25: #{block_forward.9} parent=15 // pred_check
        %p179 = pneg %p106
      $region26: #{block_forward.9} parent=15 // pred_check_branch
        %181 = sbr.rel (%p179) target = $region28
      $region27: #{block_forward.9} parent=15 // pred_region
        %p182 = scmp.lt.s32.totalorder %s16, 7
        %s183 = scalar_select %p182, %s16, 7
        %p184 = scmp.lt.s32.totalorder %s18, 0
        %s185 = scalar_select %p184, %s18, 0
        %s186 = sadd.s32 %s185, %s183
        %s187 = smul.addr %s186, 4
        %s188 = scalar_lea.vmem %s2, %s187
      $region28: #{block_forward.9} parent=15 // pred_fallthru
        _
    $region16: #{block_forward.9} parent=5 // pred_fallthru
      _
    %p189 = scmp.le.s32.totalorder 1, %s9
    %p190 = scmp.lt.s32.totalorder %s9, 9
    %p191 = pnand %p189, %p190
    %p192 = pneg %p191
    // Predicated region
    $region29: #{block_forward.9} parent=5 // pred_check
      _
    $region30: #{block_forward.9} parent=5 // pred_check_branch
      %194 = sbr.rel (%p191) target = $region32
    $region31: #{block_forward.9} parent=5 // pred_region
      %s195 = ssub.s32 %s9, 1
      %p196 = scmp.lt.s32.totalorder %s19, 7
      %s197 = scalar_select %p196, %s19, 7
      %p198 = scmp.lt.s32.totalorder %s20, 0
      %s199 = scalar_select %p198, %s20, 0
      %s200 = sadd.s32 %s199, %s197
      %s201 = smul.addr %s200, 4
      %s202 = scalar_lea.vmem %s0, %s201
      %p203 = pneg %p56
      %p204 = pneg %p53
      %p205 = scmp.lt.s32.totalorder %s19, 7
      %s206 = scalar_select %p205, %s19, 7
      %p207 = scmp.lt.s32.totalorder %s21, 0
      %s208 = scalar_select %p207, %s21, 0
      %s209 = sadd.s32 %s208, %s206
      %s210 = smul.addr %s209, 4
      %s211 = scalar_lea.vmem %s1, %s210
      %p212 = pneg %p84
      %p213 = pneg %p81
      %p214 = scmp.lt.s32.totalorder %s19, 7
      %s215 = scalar_select %p214, %s19, 7
      %p216 = scmp.lt.s32.totalorder %s21, 0
      %s217 = scalar_select %p216, %s21, 0
      %s218 = sadd.s32 %s217, %s215
      %s219 = smul.addr %s218, 4
      %s220 = scalar_lea.vmem %s2, %s219
      %p221 = pneg %p112
      %p222 = pneg %p109
      %p223 = pneg %p140
      %p224 = pneg %p137
      %p225 = scmp.lt.s32.totalorder %s19, 7
      %s226 = scalar_select %p225, %s19, 7
      %p227 = scmp.lt.s32.totalorder %s20, 0
      %s228 = scalar_select %p227, %s20, 0
      %s229 = sadd.s32 %s228, %s226
      %s230 = smul.addr %s229, 4
      %s231 = scalar_lea.vmem %s3, %s230
      %p232 = scmp.lt.s32.totalorder %s19, 7
      %s233 = scalar_select %p232, %s19, 7
      %p234 = scmp.lt.s32.totalorder %s20, 0
      %s235 = scalar_select %p234, %s20, 0
      %s236 = sadd.s32 %s235, %s233
      %s237 = smul.addr %s236, 4
      %s238 = scalar_lea.vmem %s0, %s237
      %p239 = scmp.lt.s32.totalorder %s19, 7
      %s240 = scalar_select %p239, %s19, 7
      %p241 = scmp.lt.s32.totalorder %s21, 0
      %s242 = scalar_select %p241, %s21, 0
      %s243 = sadd.s32 %s242, %s240
      %s244 = smul.addr %s243, 4
      %s245 = scalar_lea.vmem %s1, %s244
      %p246 = scmp.lt.s32.totalorder %s19, 7
      %s247 = scalar_select %p246, %s19, 7
      %p248 = scmp.lt.s32.totalorder %s21, 0
      %s249 = scalar_select %p248, %s21, 0
      %s250 = sadd.s32 %s249, %s247
      %s251 = smul.addr %s250, 4
      %s252 = scalar_lea.vmem %s2, %s251
      %p253 = scmp.lt.s32.totalorder %s19, 7
      %s254 = scalar_select %p253, %s19, 7
      %p255 = scmp.lt.s32.totalorder %s20, 0
      %s256 = scalar_select %p255, %s20, 0
      %s257 = sadd.s32 %s256, %s254
      %s258 = smul.addr %s257, 4
      %s259 = scalar_lea.vmem %s3, %s258
      %s261 = smul.u32 %s20, 8
      %s262 = smul.u32 %s21, 8
      %p263 = scmp.eq.s32.totalorder %s21, 0
      // Predicated region
      $region33: #{block_forward.9} parent=31 // pred_check
        %p264 = pneg %p263
      $region34: #{block_forward.9} parent=31 // pred_check_branch
        %266 = sbr.rel (%p264) target = $region36
      $region35: #{block_forward.9} parent=31 // pred_region
        %vm267 = vcmask 7168
        %268 = vst.msk [vmem:[#allocation2] sm:$0xff] %vm267, -1e+30
        %269 = vst.msk [vmem:[#allocation3] sm:$0xff] %vm267, 0.0
        %vm270 = vcmask 130048
        %271 = vst.msk [vmem:[#allocation4] sm:$0xff] %vm270, 0.0
      $region36: #{block_forward.9} parent=31 // pred_fallthru
        _
      %s272 = sadd.s32 %s261, 7
      %p273 = scmp.le.s32.totalorder %s262, %s272
      // Predicated region
      $region37: #{block_forward.9} parent=31 // pred_check
        %p274 = pneg %p273
      $region38: #{block_forward.9} parent=31 // pred_check_branch
        %276 = sbr.rel (%p274) target = $region40
      $region39: #{block_forward.9} parent=31 // pred_region
        %v277 = vld [vmem:[%s238] sm:$0xf]
        %v278 = vld [vmem:[%s245] sm:$0xf]
        %v279 = vld [vmem:[%s252] sm:$0xf]
        %vm280 = vcmask 130048
        %v282 = vsel %vm280, %v277, 0
        %v285 = vsel %vm280, %v278, 0
        %287 = vmatprep.subr.bf16.mxu0 0
        %288 = vmatpush1.bf16.xpose.msra.mxu0 %v285
        %289 = vmatprep.subr.bf16.mxu0 0
        %290 = vmatpush1.bf16.xpose.msra.mxu0 0
        %291 = vmatprep.subr.bf16.mxu0 0
        %292 = vmatpush1.bf16.xpose.msra.mxu0 0
        %293 = vmatprep.subr.bf16.mxu0 0
        %294 = vmatpush1.bf16.xpose.msra.mxu0 0
        %295 = vmatprep.subr.bf16.mxu0 0
        %296 = vmatpush1.bf16.xpose.msra.mxu0 0
        %297 = vmatprep.subr.bf16.mxu0 0
        %298 = vmatpush1.bf16.xpose.msra.mxu0 0
        %299 = vmatprep.subr.bf16.mxu0 0
        %300 = vmatpush1.bf16.xpose.msra.mxu0 0
        %301 = vmatprep.subr.bf16.mxu0 0
        %302 = vmatpush1.bf16.xpose.msra.mxu0 0
        %303 = vmatprep.subr.bf16.mxu0 0
        %304 = vmatpush1.bf16.xpose.msra.mxu0 0
        %305 = vmatprep.subr.bf16.mxu0 0
        %306 = vmatpush1.bf16.xpose.msra.mxu0 0
        %307 = vmatprep.subr.bf16.mxu0 0
        %308 = vmatpush1.bf16.xpose.msra.mxu0 0
        %309 = vmatprep.subr.bf16.mxu0 0
        %310 = vmatpush1.bf16.xpose.msra.mxu0 0
        %311 = vmatprep.subr.bf16.mxu0 0
        %312 = vmatpush1.bf16.xpose.msra.mxu0 0
        %313 = vmatprep.subr.bf16.mxu0 0
        %314 = vmatpush1.bf16.xpose.msra.mxu0 0
        %315 = vmatprep.subr.bf16.mxu0 0
        %316 = vmatpush1.bf16.xpose.msra.mxu0 0
        %317 = vmatprep.subr.bf16.mxu0 0
        %318 = vmatpush1.bf16.xpose.msra.mxu0 0
        %319 = vmatprep.mubr.bf16.mxu0 0
        %320 = vmatmul.mubr.bf16.gmra.mrb[0].mxu0 %v282
        %v321 = vpop.f32.mrb[0].mxu0
        %v322 = vadd.f32 0.0, %v321
        %v323 = vpop.f32.mrb[0].mxu0
        %v324 = vpop.f32.mrb[0].mxu0
        %v325 = vpop.f32.mrb[0].mxu0
        %326 = vdwg.mxu0
        %v327 = vmul.f32 %v322, 0.25
        %v328 = vlaneseq
        %v329 = vshrl.u32 %v328, 7
        %v330 = vstv %s261
        %v331 = vadd.s32 %v330, %v329
        %v332 = vlaneseq
        %v333 = vand.u32 %v332, 127
        %v334 = vstv %s262
        %v335 = vadd.s32 %v334, %v333
        %vm336 = vcmp.le.s32.totalorder %v335, %v331
        %v337 = vsel %vm336, %v327, -1e+30
        %v338 = vld [vmem:[#allocation2] sm:$0xff]
        %vm339 = vcmask 64512
        %v340 = vsel %vm339, %v337, -inf
        %341 = vmax.xlane.f32.xlu0 %v340
        %v342 = vpop.xlane.xlu0 %341
        %v343 = vmax.f32 %v338, %v342
        %v344 = vsub.f32 %v338, %v343
        %v345 = vmul.f32 %v344, 1.442695
        %v346 = vpow.pop %v345
        %348 = vset.pattern.permute.xlu0 0
        %349 = vperm.xlu0 %348, %v343
        %v350 = vpop.permute.xlu0 %349
        %v352 = vsub.f32 %v337, %v350
        %v353 = vmul.f32 %v352, 1.442695
        %v354 = vpow.pop %v353
        %v355 = vld [vmem:[#allocation3] sm:$0xff]
        %v356 = vmul.f32 %v346, %v355
        %v357 = vsel %vm339, %v354, 0.0
        %358 = vadd.xlane.f32.xlu0 %v357
        %v359 = vpop.xlane.xlu0 %358
        %v360 = vadd.f32 %v356, %v359
        %vm361 = vcmask 7168
        %362 = vst.msk [vmem:[#allocation3] sm:$0xff] %vm361, %v360
        %v363 = vld [vmem:[#allocation4] sm:$0xff]
        %365 = vset.pattern.permute.xlu0 0
        %366 = vperm.xlu0 %365, %v346
        %v367 = vpop.permute.xlu0 %366
        %v369 = vmul.f32 %v367, %v363
        %v370 = vpack.c.bf16 %v354, %v354
        %v372 = vsel %vm339, %v370, 0
        %vm374 = vcmask 1043456
        %v376 = vsel %vm374, %v279, 0
        %378 = vmatprep.subr.bf16.mxu0 0
        %379 = vmatpush1.bf16.msra.mxu0 %v376
        %380 = vmatprep.subr.bf16.mxu0 0
        %381 = vmatpush1.bf16.msra.mxu0 0
        %382 = vmatprep.subr.bf16.mxu0 0
        %383 = vmatpush1.bf16.msra.mxu0 0
        %384 = vmatprep.subr.bf16.mxu0 0
        %385 = vmatpush1.bf16.msra.mxu0 0
        %386 = vmatprep.subr.bf16.mxu0 0
        %387 = vmatpush1.bf16.msra.mxu0 0
        %388 = vmatprep.subr.bf16.mxu0 0
        %389 = vmatpush1.bf16.msra.mxu0 0
        %390 = vmatprep.subr.bf16.mxu0 0
        %391 = vmatpush1.bf16.msra.mxu0 0
        %392 = vmatprep.subr.bf16.mxu0 0
        %393 = vmatpush1.bf16.msra.mxu0 0
        %394 = vmatprep.subr.bf16.mxu0 0
        %395 = vmatpush1.bf16.msra.mxu0 0
        %396 = vmatprep.subr.bf16.mxu0 0
        %397 = vmatpush1.bf16.msra.mxu0 0
        %398 = vmatprep.subr.bf16.mxu0 0
        %399 = vmatpush1.bf16.msra.mxu0 0
        %400 = vmatprep.subr.bf16.mxu0 0
        %401 = vmatpush1.bf16.msra.mxu0 0
        %402 = vmatprep.subr.bf16.mxu0 0
        %403 = vmatpush1.bf16.msra.mxu0 0
        %404 = vmatprep.subr.bf16.mxu0 0
        %405 = vmatpush1.bf16.msra.mxu0 0
        %406 = vmatprep.subr.bf16.mxu0 0
        %407 = vmatpush1.bf16.msra.mxu0 0
        %408 = vmatprep.subr.bf16.mxu0 0
        %409 = vmatpush1.bf16.msra.mxu0 0
        %410 = vmatprep.mubr.bf16.mxu0 0
        %411 = vmatmul.mubr.bf16.gmra.mrb[0].mxu0 %v372
        %v412 = vpop.f32.mrb[0].mxu0
        %v413 = vadd.f32 0.0, %v412
        %v414 = vpop.f32.mrb[0].mxu0
        %v415 = vpop.f32.mrb[0].mxu0
        %v416 = vpop.f32.mrb[0].mxu0
        %417 = vdwg.mxu0
        %v418 = vadd.f32 %v369, %v413
        %419 = vst.msk [vmem:[#allocation4] sm:$0xff] %vm280, %v418
        %420 = vst.msk [vmem:[#allocation2] sm:$0xff] %vm361, %v343
      $region40: #{block_forward.9} parent=31 // pred_fallthru
        _
      // Predicated region
      $region41: #{block_forward.9} parent=31 // pred_check
        %p421 = pneg %p263
      $region42: #{block_forward.9} parent=31 // pred_check_branch
        %423 = sbr.rel (%p421) target = $region44
      $region43: #{block_forward.9} parent=31 // pred_region
        %v424 = vld [vmem:[#allocation3] sm:$0xff]
        %v425 = vrcp.pop %v424
        %v426 = vld [vmem:[#allocation4] sm:$0xff]
        %428 = vset.pattern.permute.xlu0 0
        %429 = vperm.xlu0 %428, %v425
        %v430 = vpop.permute.xlu0 %429
        %v432 = vmul.f32 %v426, %v430
        %v433 = vpack.c.bf16 %v432, %v432
        %vm434 = vcmask 125952
        %435 = vst.msk [vmem:[%s259] sm:$0xf] %vm434, %v433
      $region44: #{block_forward.9} parent=31 // pred_fallthru
        _
      %p436 = scmp.lt.s32.totalorder %s19, 7
      %s437 = scalar_select %p436, %s19, 7
      %p438 = scmp.lt.s32.totalorder %s20, 0
      %s439 = scalar_select %p438, %s20, 0
      %s440 = sadd.s32 %s439, %s437
      %s441 = smul.addr %s440, 4
      %s442 = scalar_lea.vmem %s3, %s441
      // Predicated region
      $region45: #{block_forward.9} parent=31 // pred_check
        %p443 = pneg %p137
      $region46: #{block_forward.9} parent=31 // pred_check_branch
        %445 = sbr.rel (%p443) target = $region48
      $region47: #{block_forward.9} parent=31 // pred_region
        _
      $region48: #{block_forward.9} parent=31 // pred_fallthru
        _
    $region32: #{block_forward.9} parent=5 // pred_fallthru
      _
    %p446 = scmp.le.s32.totalorder 2, %s9
    // Predicated region
    $region49: #{block_forward.9} parent=5 // pred_check
      %p447 = pneg %p446
    $region50: #{block_forward.9} parent=5 // pred_check_branch
      %449 = sbr.rel (%p447) target = $region52
    $region51: #{block_forward.9} parent=5 // pred_region
      %s450 = ssub.s32 %s9, 2
      // Predicated region
      $region53: #{block_forward.9} parent=51 // pred_check
        %p451 = pneg %p143
      $region54: #{block_forward.9} parent=51 // pred_check_branch
        %453 = sbr.rel (%p451) target = $region56
      $region55: #{block_forward.9} parent=51 // pred_region
        %p454 = scmp.lt.s32.totalorder %s22, 7
        %s455 = scalar_select %p454, %s22, 7
        %p456 = scmp.lt.s32.totalorder %s23, 0
        %s457 = scalar_select %p456, %s23, 0
        %s458 = sadd.s32 %s457, %s455
        %s459 = smul.addr %s458, 4
        %s460 = scalar_lea.vmem %s3, %s459
      $region56: #{block_forward.9} parent=51 // pred_fallthru
        _
    $region52: #{block_forward.9} parent=5 // pred_fallthru
      _
  $region6: #{block_forward.9} parent=0 // loop_footer
    %s13 = sadd.s32 1, %s9
  $region7: #{block_forward.9} parent=0 // loop_footer_branch
    %8 = sbr.rel target = $region3
  $region8: #{block_forward.9} parent=0 // loop_exit
    _

// kernel: block_forward.12
$region0: #{block_forward.12}
  #allocation0 [shape = 'u32[]', space=smem, size = 0x4, offset = 0x4, fixed_abs, tag = 'smem constant byte address 0x4 - core index']
  #allocation1 [shape = 'u32[144,128]{1,0:T(1,128)}', space=vmem, size = 0x12000, scoped, tag = 'internal scratch']
  #allocation2 [shape = 'f32[16,256]{1,0:T(8,128)}', space=vmem, size = 0x4000, scoped, tag = 'scratch operand']
  %s0 = inlined_call_operand.vmem [shape: bf16[16,64], index: 0, kind: input, shape index: {}]
  %s1 = inlined_call_operand.vmem [shape: bf16[64,256], index: 1, kind: input, shape index: {}]
  %s2 = inlined_call_operand.vmem [shape: f32[1,256], index: 2, kind: input, shape index: {}]
  %s3 = inlined_call_operand.vmem [shape: bf16[16,256], index: 3, kind: output, shape index: {}]
  %s4 = sld [smem:[#allocation0]]
  $region30: #{block_forward.12} parent=0
    _
  %s6 = ssub.s32 1, %s4
  %s7 = scalar_select 0, %s6, %s4
  // Predicated region
  $region2: #{block_forward.12} parent=0 // pred_check
    _
  $region3: #{block_forward.12} parent=0 // pred_check_branch
    %9 = sbr.rel (0) target = $region5
  $region4: #{block_forward.12} parent=0 // pred_region
    _
  $region5: #{block_forward.12} parent=0 // pred_fallthru
    _
  // Predicated region
  $region6: #{block_forward.12} parent=0 // pred_check
    _
  $region7: #{block_forward.12} parent=0 // pred_check_branch
    %11 = sbr.rel (0) target = $region9
  $region8: #{block_forward.12} parent=0 // pred_region
    _
  $region9: #{block_forward.12} parent=0 // pred_fallthru
    _
  // Predicated region
  $region10: #{block_forward.12} parent=0 // pred_check
    _
  $region11: #{block_forward.12} parent=0 // pred_check_branch
    %13 = sbr.rel (0) target = $region13
  $region12: #{block_forward.12} parent=0 // pred_region
    _
  $region13: #{block_forward.12} parent=0 // pred_fallthru
    _
  %p15 = scmp.eq.s32.totalorder 0, 0
  // Predicated region
  $region14: #{block_forward.12} parent=0 // pred_check
    %p16 = pneg %p15
  $region15: #{block_forward.12} parent=0 // pred_check_branch
    %18 = sbr.rel (%p16) target = $region17
  $region16: #{block_forward.12} parent=0 // pred_region
    %19 = vst [vmem:[#allocation2] sm:$0xff] 0.0
    %20 = vst [vmem:[#allocation2 + $0x8] sm:$0xff] 0.0
    %21 = vst [vmem:[#allocation2 + $0x10] sm:$0xff] 0.0
    %22 = vst [vmem:[#allocation2 + $0x18] sm:$0xff] 0.0
  $region17: #{block_forward.12} parent=0 // pred_fallthru
    _
  %v23 = vld [vmem:[%s0] sm:$0xf]
  %v24 = vld [vmem:[%s0 + $0x4] sm:$0xf]
  %v25 = vld [vmem:[%s1] sm:$0xff]
  %v26 = vld [vmem:[%s1 + $0x8] sm:$0xff]
  %v27 = vld [vmem:[%s1 + $0x10] sm:$0xff]
  %v28 = vld [vmem:[%s1 + $0x18] sm:$0xff]
  %v29 = vld [vmem:[%s1 + $0x20] sm:$0xff]
  %v30 = vld [vmem:[%s1 + $0x28] sm:$0xff]
  %v31 = vld [vmem:[%s1 + $0x30] sm:$0xff]
  %v32 = vld [vmem:[%s1 + $0x38] sm:$0xff]
  %v33 = vld [vmem:[#allocation2] sm:$0xff]
  %v34 = vld [vmem:[#allocation2 + $0x8] sm:$0xff]
  %v35 = vld [vmem:[#allocation2 + $0x10] sm:$0xff]
  %v36 = vld [vmem:[#allocation2 + $0x18] sm:$0xff]
  %v39 = vunpack.c.l.b16 %v23
  %v40 = vunpack.c.l.b16 %v24
  %v41 = vpack.c.b16 %v40, %v39
  %v50 = vunpack.c.l.b16 %v25
  %v51 = vunpack.c.h.b16 %v25
  %v52 = vunpack.c.l.b16 %v26
  %v53 = vunpack.c.h.b16 %v26
  %v54 = vunpack.c.l.b16 %v27
  %v55 = vunpack.c.h.b16 %v27
  %v56 = vunpack.c.l.b16 %v28
  %v57 = vunpack.c.h.b16 %v28
  %v58 = vunpack.c.l.b16 %v29
  %v59 = vunpack.c.h.b16 %v29
  %v60 = vunpack.c.l.b16 %v30
  %v61 = vunpack.c.h.b16 %v30
  %v62 = vunpack.c.l.b16 %v31
  %v63 = vunpack.c.h.b16 %v31
  %v64 = vunpack.c.l.b16 %v32
  %v65 = vunpack.c.h.b16 %v32
  %v66 = vpack.c.b16 %v52, %v50
  %v67 = vpack.c.b16 %v53, %v51
  %v68 = vpack.c.b16 %v56, %v54
  %v69 = vpack.c.b16 %v57, %v55
  %v70 = vpack.c.b16 %v60, %v58
  %v71 = vpack.c.b16 %v61, %v59
  %v72 = vpack.c.b16 %v64, %v62
  %v73 = vpack.c.b16 %v65, %v63
  %vm82 = vcmask 523264
  %v84 = vsel %vm82, %v41, 0
  %86 = vmatprep.subr.bf16.mxu0 %v67
  %87 = vmatpush1.bf16.msra.mxu0 %v66
  %88 = vmatprep.subr.bf16.mxu0 %v69
  %89 = vmatpush1.bf16.msra.mxu0 %v68
  %90 = vmatprep.subr.bf16.mxu0 %v71
  %91 = vmatpush1.bf16.msra.mxu0 %v70
  %92 = vmatprep.subr.bf16.mxu0 %v73
  %93 = vmatpush1.bf16.msra.mxu0 %v72
  %94 = vmatprep.subr.bf16.mxu0 0
  %95 = vmatpush1.bf16.msra.mxu0 0
  %96 = vmatprep.subr.bf16.mxu0 0
  %97 = vmatpush1.bf16.msra.mxu0 0
  %98 = vmatprep.subr.bf16.mxu0 0
  %99 = vmatpush1.bf16.msra.mxu0 0
  %100 = vmatprep.subr.bf16.mxu0 0
  %101 = vmatpush1.bf16.msra.mxu0 0
  %102 = vmatprep.subr.bf16.mxu0 0
  %103 = vmatpush1.bf16.msra.mxu0 0
  %104 = vmatprep.subr.bf16.mxu0 0
  %105 = vmatpush1.bf16.msra.mxu0 0
  %106 = vmatprep.subr.bf16.mxu0 0
  %107 = vmatpush1.bf16.msra.mxu0 0
  %108 = vmatprep.subr.bf16.mxu0 0
  %109 = vmatpush1.bf16.msra.mxu0 0
  %110 = vmatprep.subr.bf16.mxu0 0
  %111 = vmatpush1.bf16.msra.mxu0 0
  %112 = vmatprep.subr.bf16.mxu0 0
  %113 = vmatpush1.bf16.msra.mxu0 0
  %114 = vmatprep.subr.bf16.mxu0 0
  %115 = vmatpush1.bf16.msra.mxu0 0
  %116 = vmatprep.subr.bf16.mxu0 0
  %117 = vmatpush1.bf16.msra.mxu0 0
  %118 = vmatprep.mubr.bf16.mxu0 0
  %119 = vmatmul.mubr.bf16.gmra.mrb[0].mxu0 %v84
  %v120 = vpop.f32.mrb[0].mxu0
  %v121 = vadd.f32 0.0, %v120
  %v122 = vpop.f32.mrb[0].mxu0
  %v123 = vadd.f32 0.0, %v122
  %v124 = vpop.f32.mrb[0].mxu0
  %v125 = vadd.f32 0.0, %v124
  %v126 = vpop.f32.mrb[0].mxu0
  %v127 = vadd.f32 0.0, %v126
  %128 = vdwg.mxu0
  %v129 = vadd.f32 %v33, %v121
  %v130 = vadd.f32 %v34, %v123
  %v131 = vadd.f32 %v35, %v125
  %v132 = vadd.f32 %v36, %v127
  %133 = vst [vmem:[#allocation2] sm:$0xff] %v129
  %134 = vst [vmem:[#allocation2 + $0x8] sm:$0xff] %v130
  %135 = vst [vmem:[#allocation2 + $0x10] sm:$0xff] %v131
  %136 = vst [vmem:[#allocation2 + $0x18] sm:$0xff] %v132
  // Predicated region
  $region18: #{block_forward.12} parent=0 // pred_check
    %p137 = pneg %p15
  $region19: #{block_forward.12} parent=0 // pred_check_branch
    %139 = sbr.rel (%p137) target = $region21
  $region20: #{block_forward.12} parent=0 // pred_region
    %v140 = vld [vmem:[#allocation2] sm:$0xff]
    %v141 = vld [vmem:[#allocation2 + $0x8] sm:$0xff]
    %v142 = vld [vmem:[#allocation2 + $0x10] sm:$0xff]
    %v143 = vld [vmem:[#allocation2 + $0x18] sm:$0xff]
    %v144 = vld [vmem:[%s2] sm:$0x3]
    %v146 = vlaneseq
    %v147 = vshrl.u32 %v146, 7
    %v148 = vsub.s32 0, %v147
    %v149 = vrot.slane %v144, %v148
    %v150 = vlaneseq
    %v151 = vshrl.u32 %v150, 7
    %v152 = vsub.s32 1, %v151
    %v153 = vrot.slane %v144, %v152
    %v156 = vadd.f32 %v140, %v149
    %v157 = vadd.f32 %v141, %v153
    %v158 = vadd.f32 %v142, %v149
    %v159 = vadd.f32 %v143, %v153
    %v160 = vmul.f32 %v156, 0.5
    %v161 = vmul.f32 %v157, 0.5
    %v162 = vmul.f32 %v158, 0.5
    %v163 = vmul.f32 %v159, 0.5
    %v164 = vmul.f32 %v156, 0.70710677
    %v165 = vmul.f32 %v157, 0.70710677
    %v166 = vmul.f32 %v158, 0.70710677
    %v167 = vmul.f32 %v159, 0.70710677
    %v168 = verf.f32.pop %v164
    %v169 = verf.f32.pop %v165
    %v170 = verf.f32.pop %v166
    %v171 = verf.f32.pop %v167
    %v172 = vadd.f32 %v168, 1.0
    %v173 = vadd.f32 %v169, 1.0
    %v174 = vadd.f32 %v170, 1.0
    %v175 = vadd.f32 %v171, 1.0
    %v176 = vmul.f32 %v160, %v172
    %v177 = vmul.f32 %v161, %v173
    %v178 = vmul.f32 %v162, %v174
    %v179 = vmul.f32 %v163, %v175
    %v180 = vpack.c.bf16 %v178, %v176
    %v181 = vpack.c.bf16 %v179, %v177
    %v184 = vunpack.c.l.b16 %v180
    %v185 = vunpack.c.l.b16 %v181
    %v186 = vunpack.c.h.b16 %v180
    %v187 = vunpack.c.h.b16 %v181
    %v188 = vpack.c.b16 %v185, %v184
    %v189 = vpack.c.b16 %v187, %v186
    %192 = vst [vmem:[%s3] sm:$0xff] %v188
    %193 = vst [vmem:[%s3 + $0x8] sm:$0xff] %v189
  $region21: #{block_forward.12} parent=0 // pred_fallthru
    _
  // Predicated region
  $region22: #{block_forward.12} parent=0 // pred_check
    _
  $region23: #{block_forward.12} parent=0 // pred_check_branch
    %195 = sbr.rel (0) target = $region25
  $region24: #{block_forward.12} parent=0 // pred_region
    _
  $region25: #{block_forward.12} parent=0 // pred_fallthru
    _
  // Predicated region
  $region26: #{block_forward.12} parent=0 // pred_check
    _
  $region27: #{block_forward.12} parent=0 // pred_check_branch
    %197 = sbr.rel (0) target = $region29
  $region28: #{block_forward.12} parent=0 // pred_region
    _
  $region29: #{block_forward.12} parent=0 // pred_fallthru
    _

// kernel: block_forward.10
$region0: #{block_forward.10}
  #allocation0 [shape = 'u32[]', space=smem, size = 0x4, offset = 0x4, fixed_abs, tag = 'smem constant byte address 0x4 - core index']
  #allocation1 [shape = 'u32[144,128]{1,0:T(1,128)}', space=vmem, size = 0x12000, scoped, tag = 'internal scratch']
  #allocation2 [shape = 'f32[16,64]{1,0:T(8,128)}', space=vmem, size = 0x2000, scoped, tag = 'scratch operand']
  %s0 = inlined_call_operand.vmem [shape: bf16[16,64], index: 0, kind: input, shape index: {}]
  %s1 = inlined_call_operand.vmem [shape: bf16[64,64], index: 1, kind: input, shape index: {}]
  %s2 = inlined_call_operand.vmem [shape: f32[1,64], index: 2, kind: input, shape index: {}]
  %s3 = inlined_call_operand.vmem [shape: f32[16,64], index: 3, kind: input, shape index: {}]
  %s4 = inlined_call_operand.vmem [shape: f32[16,64], index: 4, kind: output, shape index: {}]
  %s5 = sld [smem:[#allocation0]]
  $region34: #{block_forward.10} parent=0
    _
  %s7 = ssub.s32 1, %s5
  %s8 = scalar_select 0, %s7, %s5
  // Predicated region
  $region2: #{block_forward.10} parent=0 // pred_check
    _
  $region3: #{block_forward.10} parent=0 // pred_check_branch
    %10 = sbr.rel (0) target = $region5
  $region4: #{block_forward.10} parent=0 // pred_region
    _
  $region5: #{block_forward.10} parent=0 // pred_fallthru
    _
  // Predicated region
  $region6: #{block_forward.10} parent=0 // pred_check
    _
  $region7: #{block_forward.10} parent=0 // pred_check_branch
    %12 = sbr.rel (0) target = $region9
  $region8: #{block_forward.10} parent=0 // pred_region
    _
  $region9: #{block_forward.10} parent=0 // pred_fallthru
    _
  // Predicated region
  $region10: #{block_forward.10} parent=0 // pred_check
    _
  $region11: #{block_forward.10} parent=0 // pred_check_branch
    %14 = sbr.rel (0) target = $region13
  $region12: #{block_forward.10} parent=0 // pred_region
    _
  $region13: #{block_forward.10} parent=0 // pred_fallthru
    _
  // Predicated region
  $region14: #{block_forward.10} parent=0 // pred_check
    _
  $region15: #{block_forward.10} parent=0 // pred_check_branch
    %16 = sbr.rel (0) target = $region17
  $region16: #{block_forward.10} parent=0 // pred_region
    _
  $region17: #{block_forward.10} parent=0 // pred_fallthru
    _
  %p18 = scmp.eq.s32.totalorder 0, 0
  // Predicated region
  $region18: #{block_forward.10} parent=0 // pred_check
    %p19 = pneg %p18
  $region19: #{block_forward.10} parent=0 // pred_check_branch
    %21 = sbr.rel (%p19) target = $region21
  $region20: #{block_forward.10} parent=0 // pred_region
    %vm22 = vcmask 523264
    %23 = vst.msk [vmem:[#allocation2] sm:$0xff] %vm22, 0.0
    %24 = vst.msk [vmem:[#allocation2 + $0x8] sm:$0xff] %vm22, 0.0
  $region21: #{block_forward.10} parent=0 // pred_fallthru
    _
  %v25 = vld [vmem:[%s0] sm:$0xf]
  %v26 = vld [vmem:[%s0 + $0x4] sm:$0xf]
  %v27 = vld [vmem:[%s1] sm:$0xf]
  %v28 = vld [vmem:[%s1 + $0x4] sm:$0xf]
  %v29 = vld [vmem:[%s1 + $0x8] sm:$0xf]
  %v30 = vld [vmem:[%s1 + $0xc] sm:$0xf]
  %v31 = vld [vmem:[%s1 + $0x10] sm:$0xf]
  %v32 = vld [vmem:[%s1 + $0x14] sm:$0xf]
  %v33 = vld [vmem:[%s1 + $0x18] sm:$0xf]
  %v34 = vld [vmem:[%s1 + $0x1c] sm:$0xf]
  %v35 = vld [vmem:[#allocation2] sm:$0xff]
  %v36 = vld [vmem:[#allocation2 + $0x8] sm:$0xff]
  %v39 = vunpack.c.l.b16 %v25
  %v40 = vunpack.c.l.b16 %v26
  %v41 = vpack.c.b16 %v40, %v39
  %v50 = vunpack.c.l.b16 %v27
  %v51 = vunpack.c.l.b16 %v28
  %v52 = vunpack.c.l.b16 %v29
  %v53 = vunpack.c.l.b16 %v30
  %v54 = vunpack.c.l.b16 %v31
  %v55 = vunpack.c.l.b16 %v32
  %v56 = vunpack.c.l.b16 %v33
  %v57 = vunpack.c.l.b16 %v34
  %v58 = vpack.c.b16 %v51, %v50
  %v59 = vpack.c.b16 %v53, %v52
  %v60 = vpack.c.b16 %v55, %v54
  %v61 = vpack.c.b16 %v57, %v56
  %vm66 = vcmask 523264
  %v68 = vsel %vm66, %v41, 0
  %70 = vmatprep.subr.bf16.mxu0 0
  %71 = vmatpush1.bf16.msra.mxu0 %v58
  %72 = vmatprep.subr.bf16.mxu0 0
  %73 = vmatpush1.bf16.msra.mxu0 %v59
  %74 = vmatprep.subr.bf16.mxu0 0
  %75 = vmatpush1.bf16.msra.mxu0 %v60
  %76 = vmatprep.subr.bf16.mxu0 0
  %77 = vmatpush1.bf16.msra.mxu0 %v61
  %78 = vmatprep.subr.bf16.mxu0 0
  %79 = vmatpush1.bf16.msra.mxu0 0
  %80 = vmatprep.subr.bf16.mxu0 0
  %81 = vmatpush1.bf16.msra.mxu0 0
  %82 = vmatprep.subr.bf16.mxu0 0
  %83 = vmatpush1.bf16.msra.mxu0 0
  %84 = vmatprep.subr.bf16.mxu0 0
  %85 = vmatpush1.bf16.msra.mxu0 0
  %86 = vmatprep.subr.bf16.mxu0 0
  %87 = vmatpush1.bf16.msra.mxu0 0
  %88 = vmatprep.subr.bf16.mxu0 0
  %89 = vmatpush1.bf16.msra.mxu0 0
  %90 = vmatprep.subr.bf16.mxu0 0
  %91 = vmatpush1.bf16.msra.mxu0 0
  %92 = vmatprep.subr.bf16.mxu0 0
  %93 = vmatpush1.bf16.msra.mxu0 0
  %94 = vmatprep.subr.bf16.mxu0 0
  %95 = vmatpush1.bf16.msra.mxu0 0
  %96 = vmatprep.subr.bf16.mxu0 0
  %97 = vmatpush1.bf16.msra.mxu0 0
  %98 = vmatprep.subr.bf16.mxu0 0
  %99 = vmatpush1.bf16.msra.mxu0 0
  %100 = vmatprep.subr.bf16.mxu0 0
  %101 = vmatpush1.bf16.msra.mxu0 0
  %102 = vmatprep.mubr.bf16.mxu0 0
  %103 = vmatmul.mubr.bf16.gmra.mrb[0].mxu0 %v68
  %v104 = vpop.f32.mrb[0].mxu0
  %v105 = vadd.f32 0.0, %v104
  %v106 = vpop.f32.mrb[0].mxu0
  %v107 = vpop.f32.mrb[0].mxu0
  %v108 = vadd.f32 0.0, %v107
  %v109 = vpop.f32.mrb[0].mxu0
  %110 = vdwg.mxu0
  %v111 = vadd.f32 %v35, %v105
  %v112 = vadd.f32 %v36, %v108
  %113 = vst.msk [vmem:[#allocation2] sm:$0xff] %vm66, %v111
  %114 = vst.msk [vmem:[#allocation2 + $0x8] sm:$0xff] %vm66, %v112
  // Predicated region
  $region22: #{block_forward.10} parent=0 // pred_check
    %p115 = pneg %p18
  $region23: #{block_forward.10} parent=0 // pred_check_branch
    %117 = sbr.rel (%p115) target = $region25
  $region24: #{block_forward.10} parent=0 // pred_region
    %v118 = vld [vmem:[#allocation2] sm:$0xff]
    %v119 = vld [vmem:[#allocation2 + $0x8] sm:$0xff]
    %v120 = vld [vmem:[%s2] sm:$0x1]
    %v122 = vlaneseq
    %v123 = vshrl.u32 %v122, 7
    %v124 = vsub.s32 0, %v123
    %v125 = vrot.slane %v120, %v124
    %v127 = vadd.f32 %v118, %v125
    %v128 = vadd.f32 %v119, %v125
    %v129 = vld [vmem:[%s3] sm:$0xff]
    %v130 = vld [vmem:[%s3 + $0x8] sm:$0xff]
    %v131 = vadd.f32 %v127, %v129
    %v132 = vadd.f32 %v128, %v130
    %133 = vst.msk [vmem:[%s4] sm:$0xff] %vm66, %v131
    %134 = vst.msk [vmem:[%s4 + $0x8] sm:$0xff] %vm66, %v132
  $region25: #{block_forward.10} parent=0 // pred_fallthru
    _
  // Predicated region
  $region26: #{block_forward.10} parent=0 // pred_check
    _
  $region27: #{block_forward.10} parent=0 // pred_check_branch
    %136 = sbr.rel (0) target = $region29
  $region28: #{block_forward.10} parent=0 // pred_region
    _
  $region29: #{block_forward.10} parent=0 // pred_fallthru
    _
  // Predicated region
  $region30: #{block_forward.10} parent=0 // pred_check
    _
  $region31: #{block_forward.10} parent=0 // pred_check_branch
    %138 = sbr.rel (0) target = $region33
  $region32: #{block_forward.10} parent=0 // pred_region
    _
  $region33: #{block_forward.10} parent=0 // pred_fallthru
    _

// kernel: block_forward.13
$region0: #{block_forward.13}
  #allocation0 [shape = 'u32[]', space=smem, size = 0x4, offset = 0x4, fixed_abs, tag = 'smem constant byte address 0x4 - core index']
  #allocation1 [shape = 'u32[144,128]{1,0:T(1,128)}', space=vmem, size = 0x12000, scoped, tag = 'internal scratch']
  #allocation2 [shape = 'f32[16,64]{1,0:T(8,128)}', space=vmem, size = 0x2000, scoped, tag = 'scratch operand']
  %s0 = inlined_call_operand.vmem [shape: bf16[16,256], index: 0, kind: input, shape index: {}]
  %s1 = inlined_call_operand.vmem [shape: bf16[256,64], index: 1, kind: input, shape index: {}]
  %s2 = inlined_call_operand.vmem [shape: f32[1,64], index: 2, kind: input, shape index: {}]
  %s3 = inlined_call_operand.vmem [shape: f32[16,64], index: 3, kind: input, shape index: {}]
  %s4 = inlined_call_operand.hbm [shape: f32[16,64], index: 4, kind: output, shape index: {}]
  %s5 = sld [smem:[#allocation0]]
  $region34: #{block_forward.13} parent=0
    _
  %s7 = ssub.s32 1, %s5
  %s8 = scalar_select 0, %s7, %s5
  $region1: #{block_forward.13} parent=0
    #allocation3 [shape = 'u8[8192]{0}', space=vmem, size = 0x2000, scoped, tag = 'output window, operand 0, single buffered']
    #allocation4 [shape = 's32[1]{0}', space=sflag, size = 0x4, scoped, tag = 'scoped memory for block_forward.13']
    %9 = vsyncpa [#allocation4], 0
    // Predicated region
    $region2: #{block_forward.13} parent=1 // pred_check
      _
    $region3: #{block_forward.13} parent=1 // pred_check_branch
      %11 = sbr.rel (0) target = $region5
    $region4: #{block_forward.13} parent=1 // pred_region
      _
    $region5: #{block_forward.13} parent=1 // pred_fallthru
      _
    // Predicated region
    $region6: #{block_forward.13} parent=1 // pred_check
      _
    $region7: #{block_forward.13} parent=1 // pred_check_branch
      %13 = sbr.rel (0) target = $region9
    $region8: #{block_forward.13} parent=1 // pred_region
      _
    $region9: #{block_forward.13} parent=1 // pred_fallthru
      _
    // Predicated region
    $region10: #{block_forward.13} parent=1 // pred_check
      _
    $region11: #{block_forward.13} parent=1 // pred_check_branch
      %15 = sbr.rel (0) target = $region13
    $region12: #{block_forward.13} parent=1 // pred_region
      _
    $region13: #{block_forward.13} parent=1 // pred_fallthru
      _
    // Predicated region
    $region14: #{block_forward.13} parent=1 // pred_check
      _
    $region15: #{block_forward.13} parent=1 // pred_check_branch
      %17 = sbr.rel (0) target = $region17
    $region16: #{block_forward.13} parent=1 // pred_region
      _
    $region17: #{block_forward.13} parent=1 // pred_fallthru
      _
    %p19 = scmp.eq.s32.totalorder 0, 0
    // Predicated region
    $region18: #{block_forward.13} parent=1 // pred_check
      %p20 = pneg %p19
    $region19: #{block_forward.13} parent=1 // pred_check_branch
      %22 = sbr.rel (%p20) target = $region21
    $region20: #{block_forward.13} parent=1 // pred_region
      %vm23 = vcmask 523264
      %24 = vst.msk [vmem:[#allocation2] sm:$0xff] %vm23, 0.0
      %25 = vst.msk [vmem:[#allocation2 + $0x8] sm:$0xff] %vm23, 0.0
    $region21: #{block_forward.13} parent=1 // pred_fallthru
      _
    %v26 = vld [vmem:[%s0] sm:$0xff]
    %v27 = vld [vmem:[%s0 + $0x8] sm:$0xff]
    %v28 = vld [vmem:[%s1] sm:$0xf]
    %v29 = vld [vmem:[%s1 + $0x4] sm:$0xf]
    %v30 = vld [vmem:[%s1 + $0x8] sm:$0xf]
    %v31 = vld [vmem:[%s1 + $0xc] sm:$0xf]
    %v32 = vld [vmem:[%s1 + $0x10] sm:$0xf]
    %v33 = vld [vmem:[%s1 + $0x14] sm:$0xf]
    %v34 = vld [vmem:[%s1 + $0x18] sm:$0xf]
    %v35 = vld [vmem:[%s1 + $0x1c] sm:$0xf]
    %v36 = vld [vmem:[%s1 + $0x20] sm:$0xf]
    %v37 = vld [vmem:[%s1 + $0x24] sm:$0xf]
    %v38 = vld [vmem:[%s1 + $0x28] sm:$0xf]
    %v39 = vld [vmem:[%s1 + $0x2c] sm:$0xf]
    %v40 = vld [vmem:[%s1 + $0x30] sm:$0xf]
    %v41 = vld [vmem:[%s1 + $0x34] sm:$0xf]
    %v42 = vld [vmem:[%s1 + $0x38] sm:$0xf]
    %v43 = vld [vmem:[%s1 + $0x3c] sm:$0xf]
    %v44 = vld [vmem:[%s1 + $0x40] sm:$0xf]
    %v45 = vld [vmem:[%s1 + $0x44] sm:$0xf]
    %v46 = vld [vmem:[%s1 + $0x48] sm:$0xf]
    %v47 = vld [vmem:[%s1 + $0x4c] sm:$0xf]
    %v48 = vld [vmem:[%s1 + $0x50] sm:$0xf]
    %v49 = vld [vmem:[%s1 + $0x54] sm:$0xf]
    %v50 = vld [vmem:[%s1 + $0x58] sm:$0xf]
    %v51 = vld [vmem:[%s1 + $0x5c] sm:$0xf]
    %v52 = vld [vmem:[%s1 + $0x60] sm:$0xf]
    %v53 = vld [vmem:[%s1 + $0x64] sm:$0xf]
    %v54 = vld [vmem:[%s1 + $0x68] sm:$0xf]
    %v55 = vld [vmem:[%s1 + $0x6c] sm:$0xf]
    %v56 = vld [vmem:[%s1 + $0x70] sm:$0xf]
    %v57 = vld [vmem:[%s1 + $0x74] sm:$0xf]
    %v58 = vld [vmem:[%s1 + $0x78] sm:$0xf]
    %v59 = vld [vmem:[%s1 + $0x7c] sm:$0xf]
    %v60 = vld [vmem:[#allocation2] sm:$0xff]
    %v61 = vld [vmem:[#allocation2 + $0x8] sm:$0xff]
    %v64 = vunpack.c.l.b16 %v26
    %v65 = vunpack.c.h.b16 %v26
    %v66 = vunpack.c.l.b16 %v27
    %v67 = vunpack.c.h.b16 %v27
    %v68 = vpack.c.b16 %v66, %v64
    %v69 = vpack.c.b16 %v67, %v65
    %v104 = vunpack.c.l.b16 %v28
    %v105 = vunpack.c.l.b16 %v29
    %v106 = vunpack.c.l.b16 %v30
    %v107 = vunpack.c.l.b16 %v31
    %v108 = vunpack.c.l.b16 %v32
    %v109 = vunpack.c.l.b16 %v33
    %v110 = vunpack.c.l.b16 %v34
    %v111 = vunpack.c.l.b16 %v35
    %v112 = vunpack.c.l.b16 %v36
    %v113 = vunpack.c.l.b16 %v37
    %v114 = vunpack.c.l.b16 %v38
    %v115 = vunpack.c.l.b16 %v39
    %v116 = vunpack.c.l.b16 %v40
    %v117 = vunpack.c.l.b16 %v41
    %v118 = vunpack.c.l.b16 %v42
    %v119 = vunpack.c.l.b16 %v43
    %v120 = vunpack.c.l.b16 %v44
    %v121 = vunpack.c.l.b16 %v45
    %v122 = vunpack.c.l.b16 %v46
    %v123 = vunpack.c.l.b16 %v47
    %v124 = vunpack.c.l.b16 %v48
    %v125 = vunpack.c.l.b16 %v49
    %v126 = vunpack.c.l.b16 %v50
    %v127 = vunpack.c.l.b16 %v51
    %v128 = vunpack.c.l.b16 %v52
    %v129 = vunpack.c.l.b16 %v53
    %v130 = vunpack.c.l.b16 %v54
    %v131 = vunpack.c.l.b16 %v55
    %v132 = vunpack.c.l.b16 %v56
    %v133 = vunpack.c.l.b16 %v57
    %v134 = vunpack.c.l.b16 %v58
    %v135 = vunpack.c.l.b16 %v59
    %v136 = vpack.c.b16 %v105, %v104
    %v137 = vpack.c.b16 %v107, %v106
    %v138 = vpack.c.b16 %v109, %v108
    %v139 = vpack.c.b16 %v111, %v110
    %v140 = vpack.c.b16 %v113, %v112
    %v141 = vpack.c.b16 %v115, %v114
    %v142 = vpack.c.b16 %v117, %v116
    %v143 = vpack.c.b16 %v119, %v118
    %v144 = vpack.c.b16 %v121, %v120
    %v145 = vpack.c.b16 %v123, %v122
    %v146 = vpack.c.b16 %v125, %v124
    %v147 = vpack.c.b16 %v127, %v126
    %v148 = vpack.c.b16 %v129, %v128
    %v149 = vpack.c.b16 %v131, %v130
    %v150 = vpack.c.b16 %v133, %v132
    %v151 = vpack.c.b16 %v135, %v134
    %168 = vmatprep.subr.bf16.mxu0 0
    %169 = vmatpush1.bf16.msra.mxu0 %v136
    %170 = vmatprep.subr.bf16.mxu0 0
    %171 = vmatpush1.bf16.msra.mxu0 %v137
    %172 = vmatprep.subr.bf16.mxu0 0
    %173 = vmatpush1.bf16.msra.mxu0 %v138
    %174 = vmatprep.subr.bf16.mxu0 0
    %175 = vmatpush1.bf16.msra.mxu0 %v139
    %176 = vmatprep.subr.bf16.mxu0 0
    %177 = vmatpush1.bf16.msra.mxu0 %v140
    %178 = vmatprep.subr.bf16.mxu0 0
    %179 = vmatpush1.bf16.msra.mxu0 %v141
    %180 = vmatprep.subr.bf16.mxu0 0
    %181 = vmatpush1.bf16.msra.mxu0 %v142
    %182 = vmatprep.subr.bf16.mxu0 0
    %183 = vmatpush1.bf16.msra.mxu0 %v143
    %184 = vmatprep.subr.bf16.mxu0 0
    %185 = vmatpush1.bf16.msra.mxu0 %v144
    %186 = vmatprep.subr.bf16.mxu0 0
    %187 = vmatpush1.bf16.msra.mxu0 %v145
    %188 = vmatprep.subr.bf16.mxu0 0
    %189 = vmatpush1.bf16.msra.mxu0 %v146
    %190 = vmatprep.subr.bf16.mxu0 0
    %191 = vmatpush1.bf16.msra.mxu0 %v147
    %192 = vmatprep.subr.bf16.mxu0 0
    %193 = vmatpush1.bf16.msra.mxu0 %v148
    %194 = vmatprep.subr.bf16.mxu0 0
    %195 = vmatpush1.bf16.msra.mxu0 %v149
    %196 = vmatprep.subr.bf16.mxu0 0
    %197 = vmatpush1.bf16.msra.mxu0 %v150
    %198 = vmatprep.subr.bf16.mxu0 0
    %199 = vmatpush1.bf16.msra.mxu0 %v151
    %200 = vmatprep.mubr.bf16.mxu0 %v69
    %201 = vmatmul.mubr.bf16.gmra.mrb[0].mxu0 %v68
    %v202 = vpop.f32.mrb[0].mxu0
    %v203 = vadd.f32 0.0, %v202
    %v204 = vpop.f32.mrb[0].mxu0
    %v205 = vpop.f32.mrb[0].mxu0
    %v206 = vadd.f32 0.0, %v205
    %v207 = vpop.f32.mrb[0].mxu0
    %208 = vdwg.mxu0
    %v209 = vadd.f32 %v60, %v203
    %v210 = vadd.f32 %v61, %v206
    %vm211 = vcmask 523264
    %212 = vst.msk [vmem:[#allocation2] sm:$0xff] %vm211, %v209
    %213 = vst.msk [vmem:[#allocation2 + $0x8] sm:$0xff] %vm211, %v210
    // Predicated region
    $region22: #{block_forward.13} parent=1 // pred_check
      %p214 = pneg %p19
    $region23: #{block_forward.13} parent=1 // pred_check_branch
      %216 = sbr.rel (%p214) target = $region25
    $region24: #{block_forward.13} parent=1 // pred_region
      %v217 = vld [vmem:[#allocation2] sm:$0xff]
      %v218 = vld [vmem:[#allocation2 + $0x8] sm:$0xff]
      %v219 = vld [vmem:[%s2] sm:$0x1]
      %v221 = vlaneseq
      %v222 = vshrl.u32 %v221, 7
      %v223 = vsub.s32 0, %v222
      %v224 = vrot.slane %v219, %v223
      %v226 = vadd.f32 %v217, %v224
      %v227 = vadd.f32 %v218, %v224
      %v228 = vld [vmem:[%s3] sm:$0xff]
      %v229 = vld [vmem:[%s3 + $0x8] sm:$0xff]
      %v230 = vadd.f32 %v226, %v228
      %v231 = vadd.f32 %v227, %v229
      %232 = vst.msk [vmem:[#allocation3] sm:$0xff] %vm211, %v230
      %233 = vst.msk [vmem:[#allocation3 + $0x8] sm:$0xff] %vm211, %v231
    $region25: #{block_forward.13} parent=1 // pred_fallthru
      _
    // Predicated region
    $region26: #{block_forward.13} parent=1 // pred_check
      _
    $region27: #{block_forward.13} parent=1 // pred_check_branch
      %235 = sbr.rel (0) target = $region29
    $region28: #{block_forward.13} parent=1 // pred_region
      %s237 = ssub.s32 256, 256
      %238 = vsyncadd [#allocation4], %s237
      %s239 = sshll.u32 [#allocation3], 4
      %s240 = int_to_ptr.vmem [resolvable:$true] %s239
      %245 = dma.vmem_to_hbm [thread:$0]  %s240, 256, %s4, [#allocation4], 128, 128, 8
    $region29: #{block_forward.13} parent=1 // pred_fallthru
      _
    // Predicated region
    $region30: #{block_forward.13} parent=1 // pred_check
      _
    $region31: #{block_forward.13} parent=1 // pred_check_branch
      %247 = sbr.rel (0) target = $region33
    $region32: #{block_forward.13} parent=1 // pred_region
      %248 = dma.done [#allocation4], 256
    $region33: #{block_forward.13} parent=1 // pred_fallthru
      _
    %249 = vsyncpa [#allocation4], 1

</llo_original>
